<compile_context>
chip_gen: v7x
topology: tpu7x:2x2x1
jax: 0.10.0
libtpu: 0.0.40
codegen_flags: <defaults>
</compile_context>

<pallas_src>
import math
import functools

import jax
import jax.numpy as jnp
import numpy as np
from jax.experimental import pallas as pl
from jax.experimental.pallas import tpu as pltpu


# ------------------------------ Pallas kernel ------------------------------

def _layer_norm(x, gamma, beta, eps=1e-6):
    mean = jnp.mean(x, axis=-1, keepdims=True)
    var = jnp.mean((x - mean) ** 2, axis=-1, keepdims=True)
    return (x - mean) * jax.lax.rsqrt(var + eps) * gamma + beta


def encoder_stack_kernel(num_heads,
                         x_ref, bias_ref,
                         wqkv_ref, wo_ref, w1_ref, w2_ref, vecs_ref,
                         out_ref):
    layer = pl.program_id(0)

    # Layer 0: seed the resident activation.  The output block has a constant
    # block index, so it stays in VMEM across all layers and HBM is written
    # only once, after the last grid step.
    @pl.when(layer == 0)
    def _():
        out_ref[...] = x_ref[...]

    x2 = out_ref[...]                              # (BS, D) f32 resident activation
    BS, D = x2.shape
    H = num_heads
    depth = D // H
    dff = w1_ref.shape[-1]

    bias = bias_ref[...]                           # (B, S, S) precomputed f32 bias
    B, S, _ = bias.shape

    wqkv = wqkv_ref[0]                             # (D, 3D)  bf16, Q cols pre-scaled
    wo = wo_ref[0]                                 # (D, D)   bf16
    w1 = w1_ref[0]                                 # (D, dff) bf16
    w2 = w2_ref[0]                                 # (dff, D) bf16
    vecs = vecs_ref[0]                             # (8, W)   f32 packed small vectors

    bqkv = vecs[0:1, 0:3 * D]                      # fused QKV bias (Q part pre-scaled)
    b1 = vecs[1:2, 0:dff]
    bo = vecs[2:3, 0:D]
    gf = vecs[3:4, 0:D]
    bf_ = vecs[4:5, 0:D]
    b2 = vecs[5:6, 0:D]
    g2 = vecs[6:7, 0:D]
    be2 = vecs[7:8, 0:D]

    xb = x2.astype(jnp.bfloat16)

    # ---- fused QKV: ONE (BS,D)x(D,3D) MXU matmul, f32 accumulate + f32 bias ----
    qkv = jnp.dot(xb, wqkv, preferred_element_type=jnp.float32) + bqkv   # (BS, 3D)

    # ---- attention, unrolled over the few heads (3-D tiles, single batch dim) ----
    ctx_heads = []
    for h in range(H):
        lo = h * depth
        q_h = qkv[:, lo:lo + depth].reshape(B, S, depth)          # already /sqrt(depth)
        k_h = qkv[:, D + lo:D + lo + depth].reshape(B, S, depth)
        v_h = qkv[:, 2 * D + lo:2 * D + lo + depth].reshape(B, S, depth)

        logits = jnp.einsum('bqd,bkd->bqk',
                            q_h.astype(jnp.bfloat16), k_h.astype(jnp.bfloat16),
                            preferred_element_type=jnp.float32) + bias   # (B,S,S) f32
        m = jnp.max(logits, axis=-1, keepdims=True)
        e = jnp.exp(logits - m)
        p = e / jnp.sum(e, axis=-1, keepdims=True)                # exact softmax (f32)

        ctx_heads.append(jnp.einsum('bqk,bkd->bqd',
                                    p.astype(jnp.bfloat16),
                                    v_h.astype(jnp.bfloat16),
                                    preferred_element_type=jnp.float32))  # (B,S,depth)

    # head "concat" = lane concatenation; equals transpose(0,2,1,3)+view in PyTorch
    ctx = jnp.concatenate(ctx_heads, axis=-1).reshape(BS, D)

    # ---- output projection: ONE (BS,D)x(D,D) MXU matmul, wo in natural layout ----
    attn_out = jnp.dot(ctx.astype(jnp.bfloat16), wo,
                       preferred_element_type=jnp.float32) + bo          # (BS, D)

    # ---- residual 1 ----
    out1 = x2 + attn_out

    # ---- position-wise FFN (its own pre-LN and residual, as in the source) ----
    ln1 = _layer_norm(out1, gf, bf_)
    inter = jnp.maximum(
        jnp.dot(ln1.astype(jnp.bfloat16), w1,
                preferred_element_type=jnp.float32) + b1, 0.0)
    ffn_out = jnp.dot(inter.astype(jnp.bfloat16), w2,
                      preferred_element_type=jnp.float32) + b2 + out1

    # ---- final LN of (out1 + ffn_out), exactly as written in PyTorch ----
    out_ref[...] = _layer_norm(out1 + ffn_out, g2, be2)


def encoder_stack(x0, bias, packed, num_heads):
    """x0: (B*S, D) f32 seed activation; bias: (B, S, S) f32 additive bias."""
    wqkv, wo, w1, w2, vecs = packed
    L, D, _ = wqkv.shape
    dff = w1.shape[-1]
    B, S, _ = bias.shape
    BS = B * S
    W = vecs.shape[-1]

    in_specs = [
        pl.BlockSpec((BS, D), lambda l: (0, 0)),             # seed activation
        pl.BlockSpec((B, S, S), lambda l: (0, 0, 0)),         # precomputed attn bias
        pl.BlockSpec((1, D, 3 * D), lambda l: (l, 0, 0)),     # fused QKV weights (bf16)
        pl.BlockSpec((1, D, D), lambda l: (l, 0, 0)),         # wo (bf16)
        pl.BlockSpec((1, D, dff), lambda l: (l, 0, 0)),       # w1 (bf16)
        pl.BlockSpec((1, dff, D), lambda l: (l, 0, 0)),       # w2 (bf16)
        pl.BlockSpec((1, 8, W), lambda l: (l, 0, 0)),         # packed small vectors (f32)
    ]
    out_spec = pl.BlockSpec((BS, D), lambda l: (0, 0))        # resident activation

    # Size the VMEM limit from the actual block shapes (double-buffered streamed
    # weights + resident activation/bias + intermediate headroom), not a constant.
    per_layer_weight_bytes = (wqkv.nbytes + wo.nbytes + w1.nbytes
                              + w2.nbytes + vecs.nbytes) // L
    resident_bytes = 2 * x0.nbytes + bias.nbytes
    need = 2 * per_layer_weight_bytes + 2 * resident_bytes + (2 << 20)
    vmem_limit = int(min(100 * (1 << 20), max(16 * (1 << 20), need)))

    return pl.pallas_call(
        functools.partial(encoder_stack_kernel, num_heads),
        grid=(L,),
        in_specs=in_specs,
        out_specs=out_spec,
        out_shape=jax.ShapeDtypeStruct((BS, D), jnp.float32),
        compiler_params=pltpu.CompilerParams(
            dimension_semantics=("arbitrary",),   # layers are sequential
            vmem_limit_bytes=vmem_limit,
        ),
    )(x0, bias, wqkv, wo, w1, w2, vecs)


# ------------------------------ parameter init ------------------------------

def make_layer_params(key, d_model, dff):
    ks = jax.random.split(key, 6)

    def lin(k, din, dout):
        kw, kb = jax.random.split(k)
        w = jax.random.normal(kw, (din, dout), jnp.float32) * 0.02
        b = jax.random.normal(kb, (1, dout), jnp.float32) * 0.02
        return w, b

    wq, bq = lin(ks[0], d_model, d_model)
    wk, bk = lin(ks[1], d_model, d_model)
    wv, bv = lin(ks[2], d_model, d_model)
    wo, bo = lin(ks[3], d_model, d_model)
    w1, b1 = lin(ks[4], d_model, dff)
    w2, b2 = lin(ks[5], dff, d_model)
    kg = jax.random.split(ks[5], 4)
    gf = 1.0 + jax.random.normal(kg[0], (1, d_model), jnp.float32) * 0.05
    bf = jax.random.normal(kg[1], (1, d_model), jnp.float32) * 0.05
    g2 = 1.0 + jax.random.normal(kg[2], (1, d_model), jnp.float32) * 0.05
    be2 = jax.random.normal(kg[3], (1, d_model), jnp.float32) * 0.05
    return (wq, bq, wk, bk, wv, bv, wo, bo, gf, bf, w1, b1, w2, b2, g2, be2)


def pack_params(layer_params, num_heads):
    """Repack per-layer params for the kernel: stacked layer axis, fused (D,3D)
    QKV weights with Q pre-scaled by 1/sqrt(depth), wo/w1/w2 in natural layout
    (all stored bf16), and ALL small vectors in one (8, W) f32 slab."""
    wqkv_l, wo_l, w1_l, w2_l, vec_l = [], [], [], [], []
    for (wq, bq, wk, bk, wv, bv, wo, bo, gf, bf,
         w1, b1, w2, b2, g2, be2) in layer_params:
        D = wq.shape[0]
        dff = w1.shape[-1]
        depth = D // num_heads
        scale = 1.0 / math.sqrt(depth)
        W = max(3 * D, dff, D)

        def pad(v):
            return jnp.pad(v, ((0, 0), (0, W - v.shape[-1])))

        wqkv_l.append(jnp.concatenate([wq * scale, wk, wv], axis=-1))   # (D, 3D)
        wo_l.append(wo)
        w1_l.append(w1)
        w2_l.append(w2)
        vec_l.append(jnp.concatenate([
            pad(jnp.concatenate([bq * scale, bk, bv], axis=-1)),        # row 0: bqkv
            pad(b1),                                                    # row 1: b1
            pad(bo), pad(gf), pad(bf), pad(b2), pad(g2), pad(be2),      # rows 2..7
        ], axis=0))                                                      # (8, W)

    stack = lambda ts: jnp.stack(ts, axis=0)
    return (stack(wqkv_l).astype(jnp.bfloat16),
            stack(wo_l).astype(jnp.bfloat16),
            stack(w1_l).astype(jnp.bfloat16),
            stack(w2_l).astype(jnp.bfloat16),
            stack(vec_l))                                                # f32


# ------------------------------ Encoder forward ------------------------------

def encoder_forward(ids, mask, adjoin_matrix, emb_table, packed_params,
                    num_heads, d_model):
    # `adjoin_matrix.unsqueeze(1)` in the PyTorch source is a discarded no-op.
    x = jnp.take(emb_table, ids, axis=0) * math.sqrt(d_model)     # (B, S, D)
    # dropout -> identity (inference)
    B, S = ids.shape
    # Precompute the additive attention bias once; shared by every layer/head.
    bias = mask.reshape(B, 1, S) * (-1e9) + adjoin_matrix.reshape(B, S, S)
    out2 = encoder_stack(x.reshape(B * S, d_model), bias, packed_params, num_heads)
    return out2.reshape(B, S, d_model)


# pure-JAX reference (same math, f32 throughout) for a correctness check
def encoder_forward_ref(ids, mask, adjoin_matrix, emb_table, layer_params,
                        num_heads, d_model):
    x = jnp.take(emb_table, ids, axis=0) * math.sqrt(d_model)
    B, S, D = x.shape
    depth = D // num_heads
    mask_b = mask.reshape(B, 1, 1, S)
    adj_b = adjoin_matrix.reshape(B, 1, S, S)

    def split(t):
        return t.reshape(B, S, num_heads, depth).transpose(0, 2, 1, 3)

    def ln(t, g, b):
        mu = t.mean(-1, keepdims=True)
        var = ((t - mu) ** 2).mean(-1, keepdims=True)
        return (t - mu) / jnp.sqrt(var + 1e-6) * g + b

    for (wq, bq, wk, bk, wv, bv, wo, bo, gf, bf,
         w1, b1, w2, b2, g2, be2) in layer_params:
        q, k, v = split(x @ wq + bq), split(x @ wk + bk), split(x @ wv + bv)
        logits = q @ k.transpose(0, 1, 3, 2) / math.sqrt(depth)
        logits = logits + mask_b * (-1e9) + adj_b
        p = jax.nn.softmax(logits, axis=-1)
        attn = (p @ v).transpose(0, 2, 1, 3).reshape(B, S, D) @ wo + bo
        out1 = x + attn
        inter = jnp.maximum(ln(out1, gf, bf) @ w1 + b1, 0.0)
        ffn_out = inter @ w2 + b2 + out1
        x = ln(out1 + ffn_out, g2, be2)
    return x


# ------------------------------------ main ------------------------------------

if __name__ == "__main__":
    num_layers = 2
    d_model = 32
    num_heads = 4
    dff = 64
    input_vocab_size = 20
    B, S = 2, 8

    root = jax.random.PRNGKey(0)
    k_emb, k_ids, k_adj, k_layers = jax.random.split(root, 4)

    emb_table = jax.random.normal(k_emb, (input_vocab_size, d_model),
                                  jnp.float32) * 0.02
    layer_keys = jax.random.split(k_layers, num_layers)
    layer_params = [make_layer_params(k, d_model, dff) for k in layer_keys]
    packed_params = pack_params(layer_params, num_heads)

    ids = jax.random.randint(k_ids, (B, S), 0, input_vocab_size, dtype=jnp.int32)
    # padding mask (B,1,1,S): 1.0 means "masked"; mask the last position of batch 1
    mask = jnp.zeros((B, 1, 1, S), jnp.float32).at[1, 0, 0, S - 1].set(1.0)
    # adjoin matrix bias, broadcastable to (B, H, S, S)
    adjoin_matrix = jax.random.normal(k_adj, (B, 1, S, S), jnp.float32) * 0.1

    out = encoder_forward(ids, mask, adjoin_matrix, emb_table, packed_params,
                          num_heads, d_model)
    out = jax.block_until_ready(out)

    ref = encoder_forward_ref(ids, mask, adjoin_matrix, emb_table, layer_params,
                              num_heads, d_model)
    # Tolerance accounts for bf16 MXU operands in the kernel (f32 accumulation,
    # f32 bias adds / softmax / layernorms) vs. the all-f32 reference.
    np.testing.assert_allclose(np.asarray(out), np.asarray(ref),
                               rtol=2e-2, atol=2e-2)

    print("KERNEL_OK")
</pallas_src>

<mosaic_0001>
module attributes {stable_mosaic.version = 11 : i64} {
  func.func @encoder_stack_kernel(%arg0: i32, %arg1: memref<16x32xf32, #tpu.memory_space<vmem>>, %arg2: memref<2x8x8xf32, #tpu.memory_space<vmem>>, %arg3: memref<1x32x96xbf16, #tpu.memory_space<vmem>>, %arg4: memref<1x32x32xbf16, #tpu.memory_space<vmem>>, %arg5: memref<1x32x64xbf16, #tpu.memory_space<vmem>>, %arg6: memref<1x64x32xbf16, #tpu.memory_space<vmem>>, %arg7: memref<1x8x96xf32, #tpu.memory_space<vmem>>, %arg8: memref<16x32xf32, #tpu.memory_space<vmem>>) attributes {dimension_semantics = [#tpu.dimension_semantics<arbitrary>], iteration_bounds = array<i64: 2>, scalar_prefetch = 0 : i64, scratch_operands = 0 : i64, tpu.core_type = #tpu.core_type<tc>, window_params = [{pipeline_mode = #tpu.pipeline_mode<synchronous>, transform_indices = @transform_0, window_bounds = array<i64: 16, 32>}, {pipeline_mode = #tpu.pipeline_mode<synchronous>, transform_indices = @transform_1, window_bounds = array<i64: 2, 8, 8>}, {transform_indices = @transform_2, window_bounds = array<i64: 1, 32, 96>}, {transform_indices = @transform_3, window_bounds = array<i64: 1, 32, 32>}, {transform_indices = @transform_4, window_bounds = array<i64: 1, 32, 64>}, {transform_indices = @transform_5, window_bounds = array<i64: 1, 64, 32>}, {transform_indices = @transform_6, window_bounds = array<i64: 1, 8, 96>}, {pipeline_mode = #tpu.pipeline_mode<synchronous>, transform_indices = @transform_7, window_bounds = array<i64: 16, 32>}]} {
    %c0_i32 = arith.constant 0 : i32
    %0 = arith.cmpi eq, %arg0, %c0_i32 : i32
    %1 = arith.extui %0 : i1 to i32
    %c0_i32_0 = arith.constant 0 : i32
    %2 = arith.cmpi ne, %1, %c0_i32_0 : i32
    scf.if %2 {
      %c0_52 = arith.constant 0 : index
      %c0_53 = arith.constant 0 : index
      %179 = vector.load %arg1[%c0_52, %c0_53] : memref<16x32xf32, #tpu.memory_space<vmem>>, vector<16x32xf32>
      %c0_54 = arith.constant 0 : index
      %c0_55 = arith.constant 0 : index
      %180 = vector.load %arg8[%c0_54, %c0_55] : memref<16x32xf32, #tpu.memory_space<vmem>>, vector<16x32xf32>
      tpu.vector_store %arg8[%c0_54, %c0_55], %179 {strides = array<i32>} : memref<16x32xf32, #tpu.memory_space<vmem>>, vector<16x32xf32>,
    } else {
    }
    %c0 = arith.constant 0 : index
    %c0_1 = arith.constant 0 : index
    %3 = vector.load %arg8[%c0, %c0_1] : memref<16x32xf32, #tpu.memory_space<vmem>>, vector<16x32xf32>
    %c0_2 = arith.constant 0 : index
    %c0_3 = arith.constant 0 : index
    %c0_4 = arith.constant 0 : index
    %4 = vector.load %arg2[%c0_2, %c0_3, %c0_4] : memref<2x8x8xf32, #tpu.memory_space<vmem>>, vector<2x8x8xf32>
    %c0_5 = arith.constant 0 : index
    %c0_6 = arith.constant 0 : index
    %c0_7 = arith.constant 0 : index
    %5 = vector.load %arg3[%c0_5, %c0_6, %c0_7] : memref<1x32x96xbf16, #tpu.memory_space<vmem>>, vector<1x32x96xbf16>
    %6 = vector.shape_cast %5 : vector<1x32x96xbf16> to vector<32x96xbf16>
    %c0_8 = arith.constant 0 : index
    %c0_9 = arith.constant 0 : index
    %c0_10 = arith.constant 0 : index
    %7 = vector.load %arg4[%c0_8, %c0_9, %c0_10] : memref<1x32x32xbf16, #tpu.memory_space<vmem>>, vector<1x32x32xbf16>
    %8 = vector.shape_cast %7 : vector<1x32x32xbf16> to vector<32x32xbf16>
    %c0_11 = arith.constant 0 : index
    %c0_12 = arith.constant 0 : index
    %c0_13 = arith.constant 0 : index
    %9 = vector.load %arg5[%c0_11, %c0_12, %c0_13] : memref<1x32x64xbf16, #tpu.memory_space<vmem>>, vector<1x32x64xbf16>
    %10 = vector.shape_cast %9 : vector<1x32x64xbf16> to vector<32x64xbf16>
    %c0_14 = arith.constant 0 : index
    %c0_15 = arith.constant 0 : index
    %c0_16 = arith.constant 0 : index
    %11 = vector.load %arg6[%c0_14, %c0_15, %c0_16] : memref<1x64x32xbf16, #tpu.memory_space<vmem>>, vector<1x64x32xbf16>
    %12 = vector.shape_cast %11 : vector<1x64x32xbf16> to vector<64x32xbf16>
    %c0_17 = arith.constant 0 : index
    %c0_18 = arith.constant 0 : index
    %c0_19 = arith.constant 0 : index
    %13 = vector.load %arg7[%c0_17, %c0_18, %c0_19] : memref<1x8x96xf32, #tpu.memory_space<vmem>>, vector<1x8x96xf32>
    %14 = vector.shape_cast %13 : vector<1x8x96xf32> to vector<8x96xf32>
    %15 = vector.extract_strided_slice %14 {offsets = [0, 0], sizes = [1, 96], strides = [1, 1]} : vector<8x96xf32> to vector<1x96xf32>
    %16 = vector.extract_strided_slice %14 {offsets = [1, 0], sizes = [1, 64], strides = [1, 1]} : vector<8x96xf32> to vector<1x64xf32>
    %17 = vector.extract_strided_slice %14 {offsets = [2, 0], sizes = [1, 32], strides = [1, 1]} : vector<8x96xf32> to vector<1x32xf32>
    %18 = vector.extract_strided_slice %14 {offsets = [3, 0], sizes = [1, 32], strides = [1, 1]} : vector<8x96xf32> to vector<1x32xf32>
    %19 = vector.extract_strided_slice %14 {offsets = [4, 0], sizes = [1, 32], strides = [1, 1]} : vector<8x96xf32> to vector<1x32xf32>
    %20 = vector.extract_strided_slice %14 {offsets = [5, 0], sizes = [1, 32], strides = [1, 1]} : vector<8x96xf32> to vector<1x32xf32>
    %21 = vector.extract_strided_slice %14 {offsets = [6, 0], sizes = [1, 32], strides = [1, 1]} : vector<8x96xf32> to vector<1x32xf32>
    %22 = vector.extract_strided_slice %14 {offsets = [7, 0], sizes = [1, 32], strides = [1, 1]} : vector<8x96xf32> to vector<1x32xf32>
    %23 = arith.truncf %3 : vector<16x32xf32> to vector<16x32xbf16>
    %cst = arith.constant dense<0.000000e+00> : vector<16x96xf32>
    %24 = tpu.matmul %23, %6, %cst {dimension_numbers = #tpu.dot_dimension_numbers<[1], [0], [0], [1], [0, 0, 1, 1], [], []>} : vector<16x32xbf16>, vector<32x96xbf16>, vector<16x96xf32> -> vector<16x96xf32>
    %25 = vector.broadcast %15 : vector<1x96xf32> to vector<16x96xf32>
    %26 = arith.addf %24, %25 : vector<16x96xf32>
    %27 = vector.extract_strided_slice %26 {offsets = [0, 0], sizes = [16, 8], strides = [1, 1]} : vector<16x96xf32> to vector<16x8xf32>
    %28 = vector.shape_cast %27 : vector<16x8xf32> to vector<2x8x8xf32>
    %29 = vector.extract_strided_slice %26 {offsets = [0, 32], sizes = [16, 8], strides = [1, 1]} : vector<16x96xf32> to vector<16x8xf32>
    %30 = vector.shape_cast %29 : vector<16x8xf32> to vector<2x8x8xf32>
    %31 = vector.extract_strided_slice %26 {offsets = [0, 64], sizes = [16, 8], strides = [1, 1]} : vector<16x96xf32> to vector<16x8xf32>
    %32 = vector.shape_cast %31 : vector<16x8xf32> to vector<2x8x8xf32>
    %33 = arith.truncf %28 : vector<2x8x8xf32> to vector<2x8x8xbf16>
    %34 = arith.truncf %30 : vector<2x8x8xf32> to vector<2x8x8xbf16>
    "tpu.trace_start"() <{level = 10 : i32, message = "bqd,bkd->bqk"}> : () -> ()
    %cst_20 = arith.constant dense<0.000000e+00> : vector<2x8x8xf32>
    %35 = tpu.matmul %33, %34, %cst_20 {dimension_numbers = #tpu.dot_dimension_numbers<[2], [2], [1], [1], [0, 0, 0, 1, 1, 1], [0], [0]>} : vector<2x8x8xbf16>, vector<2x8x8xbf16>, vector<2x8x8xf32> -> vector<2x8x8xf32>
    "tpu.trace_stop"() : () -> ()
    %36 = arith.addf %35, %4 : vector<2x8x8xf32>
    %cst_21 = arith.constant dense<0xFF800000> : vector<2x8xf32>
    %37 = vector.multi_reduction <maximumf>, %36, %cst_21 [2] : vector<2x8x8xf32> to vector<2x8xf32>
    %38 = vector.shape_cast %37 : vector<2x8xf32> to vector<2x8x1xf32>
    %39 = vector.broadcast %38 : vector<2x8x1xf32> to vector<2x8x8xf32>
    %40 = arith.subf %36, %39 : vector<2x8x8xf32>
    %41 = math.exp %40 : vector<2x8x8xf32>
    %cst_22 = arith.constant dense<0.000000e+00> : vector<2x8xf32>
    %42 = vector.multi_reduction <add>, %41, %cst_22 [2] : vector<2x8x8xf32> to vector<2x8xf32>
    %43 = vector.shape_cast %42 : vector<2x8xf32> to vector<2x8x1xf32>
    %44 = vector.broadcast %43 : vector<2x8x1xf32> to vector<2x8x8xf32>
    %45 = arith.divf %41, %44 : vector<2x8x8xf32>
    %46 = arith.truncf %45 : vector<2x8x8xf32> to vector<2x8x8xbf16>
    %47 = arith.truncf %32 : vector<2x8x8xf32> to vector<2x8x8xbf16>
    "tpu.trace_start"() <{level = 10 : i32, message = "bqk,bkd->bqd"}> : () -> ()
    %cst_23 = arith.constant dense<0.000000e+00> : vector<2x8x8xf32>
    %48 = tpu.matmul %46, %47, %cst_23 {dimension_numbers = #tpu.dot_dimension_numbers<[2], [1], [1], [2], [0, 0, 0, 1, 1, 2], [0], [0]>} : vector<2x8x8xbf16>, vector<2x8x8xbf16>, vector<2x8x8xf32> -> vector<2x8x8xf32>
    "tpu.trace_stop"() : () -> ()
    %49 = vector.extract_strided_slice %26 {offsets = [0, 8], sizes = [16, 8], strides = [1, 1]} : vector<16x96xf32> to vector<16x8xf32>
    %50 = vector.shape_cast %49 : vector<16x8xf32> to vector<2x8x8xf32>
    %51 = vector.extract_strided_slice %26 {offsets = [0, 40], sizes = [16, 8], strides = [1, 1]} : vector<16x96xf32> to vector<16x8xf32>
    %52 = vector.shape_cast %51 : vector<16x8xf32> to vector<2x8x8xf32>
    %53 = vector.extract_strided_slice %26 {offsets = [0, 72], sizes = [16, 8], strides = [1, 1]} : vector<16x96xf32> to vector<16x8xf32>
    %54 = vector.shape_cast %53 : vector<16x8xf32> to vector<2x8x8xf32>
    %55 = arith.truncf %50 : vector<2x8x8xf32> to vector<2x8x8xbf16>
    %56 = arith.truncf %52 : vector<2x8x8xf32> to vector<2x8x8xbf16>
    "tpu.trace_start"() <{level = 10 : i32, message = "bqd,bkd->bqk"}> : () -> ()
    %cst_24 = arith.constant dense<0.000000e+00> : vector<2x8x8xf32>
    %57 = tpu.matmul %55, %56, %cst_24 {dimension_numbers = #tpu.dot_dimension_numbers<[2], [2], [1], [1], [0, 0, 0, 1, 1, 1], [0], [0]>} : vector<2x8x8xbf16>, vector<2x8x8xbf16>, vector<2x8x8xf32> -> vector<2x8x8xf32>
    "tpu.trace_stop"() : () -> ()
    %58 = arith.addf %57, %4 : vector<2x8x8xf32>
    %cst_25 = arith.constant dense<0xFF800000> : vector<2x8xf32>
    %59 = vector.multi_reduction <maximumf>, %58, %cst_25 [2] : vector<2x8x8xf32> to vector<2x8xf32>
    %60 = vector.shape_cast %59 : vector<2x8xf32> to vector<2x8x1xf32>
    %61 = vector.broadcast %60 : vector<2x8x1xf32> to vector<2x8x8xf32>
    %62 = arith.subf %58, %61 : vector<2x8x8xf32>
    %63 = math.exp %62 : vector<2x8x8xf32>
    %cst_26 = arith.constant dense<0.000000e+00> : vector<2x8xf32>
    %64 = vector.multi_reduction <add>, %63, %cst_26 [2] : vector<2x8x8xf32> to vector<2x8xf32>
    %65 = vector.shape_cast %64 : vector<2x8xf32> to vector<2x8x1xf32>
    %66 = vector.broadcast %65 : vector<2x8x1xf32> to vector<2x8x8xf32>
    %67 = arith.divf %63, %66 : vector<2x8x8xf32>
    %68 = arith.truncf %67 : vector<2x8x8xf32> to vector<2x8x8xbf16>
    %69 = arith.truncf %54 : vector<2x8x8xf32> to vector<2x8x8xbf16>
    "tpu.trace_start"() <{level = 10 : i32, message = "bqk,bkd->bqd"}> : () -> ()
    %cst_27 = arith.constant dense<0.000000e+00> : vector<2x8x8xf32>
    %70 = tpu.matmul %68, %69, %cst_27 {dimension_numbers = #tpu.dot_dimension_numbers<[2], [1], [1], [2], [0, 0, 0, 1, 1, 2], [0], [0]>} : vector<2x8x8xbf16>, vector<2x8x8xbf16>, vector<2x8x8xf32> -> vector<2x8x8xf32>
    "tpu.trace_stop"() : () -> ()
    %71 = vector.extract_strided_slice %26 {offsets = [0, 16], sizes = [16, 8], strides = [1, 1]} : vector<16x96xf32> to vector<16x8xf32>
    %72 = vector.shape_cast %71 : vector<16x8xf32> to vector<2x8x8xf32>
    %73 = vector.extract_strided_slice %26 {offsets = [0, 48], sizes = [16, 8], strides = [1, 1]} : vector<16x96xf32> to vector<16x8xf32>
    %74 = vector.shape_cast %73 : vector<16x8xf32> to vector<2x8x8xf32>
    %75 = vector.extract_strided_slice %26 {offsets = [0, 80], sizes = [16, 8], strides = [1, 1]} : vector<16x96xf32> to vector<16x8xf32>
    %76 = vector.shape_cast %75 : vector<16x8xf32> to vector<2x8x8xf32>
    %77 = arith.truncf %72 : vector<2x8x8xf32> to vector<2x8x8xbf16>
    %78 = arith.truncf %74 : vector<2x8x8xf32> to vector<2x8x8xbf16>
    "tpu.trace_start"() <{level = 10 : i32, message = "bqd,bkd->bqk"}> : () -> ()
    %cst_28 = arith.constant dense<0.000000e+00> : vector<2x8x8xf32>
    %79 = tpu.matmul %77, %78, %cst_28 {dimension_numbers = #tpu.dot_dimension_numbers<[2], [2], [1], [1], [0, 0, 0, 1, 1, 1], [0], [0]>} : vector<2x8x8xbf16>, vector<2x8x8xbf16>, vector<2x8x8xf32> -> vector<2x8x8xf32>
    "tpu.trace_stop"() : () -> ()
    %80 = arith.addf %79, %4 : vector<2x8x8xf32>
    %cst_29 = arith.constant dense<0xFF800000> : vector<2x8xf32>
    %81 = vector.multi_reduction <maximumf>, %80, %cst_29 [2] : vector<2x8x8xf32> to vector<2x8xf32>
    %82 = vector.shape_cast %81 : vector<2x8xf32> to vector<2x8x1xf32>
    %83 = vector.broadcast %82 : vector<2x8x1xf32> to vector<2x8x8xf32>
    %84 = arith.subf %80, %83 : vector<2x8x8xf32>
    %85 = math.exp %84 : vector<2x8x8xf32>
    %cst_30 = arith.constant dense<0.000000e+00> : vector<2x8xf32>
    %86 = vector.multi_reduction <add>, %85, %cst_30 [2] : vector<2x8x8xf32> to vector<2x8xf32>
    %87 = vector.shape_cast %86 : vector<2x8xf32> to vector<2x8x1xf32>
    %88 = vector.broadcast %87 : vector<2x8x1xf32> to vector<2x8x8xf32>
    %89 = arith.divf %85, %88 : vector<2x8x8xf32>
    %90 = arith.truncf %89 : vector<2x8x8xf32> to vector<2x8x8xbf16>
    %91 = arith.truncf %76 : vector<2x8x8xf32> to vector<2x8x8xbf16>
    "tpu.trace_start"() <{level = 10 : i32, message = "bqk,bkd->bqd"}> : () -> ()
    %cst_31 = arith.constant dense<0.000000e+00> : vector<2x8x8xf32>
    %92 = tpu.matmul %90, %91, %cst_31 {dimension_numbers = #tpu.dot_dimension_numbers<[2], [1], [1], [2], [0, 0, 0, 1, 1, 2], [0], [0]>} : vector<2x8x8xbf16>, vector<2x8x8xbf16>, vector<2x8x8xf32> -> vector<2x8x8xf32>
    "tpu.trace_stop"() : () -> ()
    %93 = vector.extract_strided_slice %26 {offsets = [0, 24], sizes = [16, 8], strides = [1, 1]} : vector<16x96xf32> to vector<16x8xf32>
    %94 = vector.shape_cast %93 : vector<16x8xf32> to vector<2x8x8xf32>
    %95 = vector.extract_strided_slice %26 {offsets = [0, 56], sizes = [16, 8], strides = [1, 1]} : vector<16x96xf32> to vector<16x8xf32>
    %96 = vector.shape_cast %95 : vector<16x8xf32> to vector<2x8x8xf32>
    %97 = vector.extract_strided_slice %26 {offsets = [0, 88], sizes = [16, 8], strides = [1, 1]} : vector<16x96xf32> to vector<16x8xf32>
    %98 = vector.shape_cast %97 : vector<16x8xf32> to vector<2x8x8xf32>
    %99 = arith.truncf %94 : vector<2x8x8xf32> to vector<2x8x8xbf16>
    %100 = arith.truncf %96 : vector<2x8x8xf32> to vector<2x8x8xbf16>
    "tpu.trace_start"() <{level = 10 : i32, message = "bqd,bkd->bqk"}> : () -> ()
    %cst_32 = arith.constant dense<0.000000e+00> : vector<2x8x8xf32>
    %101 = tpu.matmul %99, %100, %cst_32 {dimension_numbers = #tpu.dot_dimension_numbers<[2], [2], [1], [1], [0, 0, 0, 1, 1, 1], [0], [0]>} : vector<2x8x8xbf16>, vector<2x8x8xbf16>, vector<2x8x8xf32> -> vector<2x8x8xf32>
    "tpu.trace_stop"() : () -> ()
    %102 = arith.addf %101, %4 : vector<2x8x8xf32>
    %cst_33 = arith.constant dense<0xFF800000> : vector<2x8xf32>
    %103 = vector.multi_reduction <maximumf>, %102, %cst_33 [2] : vector<2x8x8xf32> to vector<2x8xf32>
    %104 = vector.shape_cast %103 : vector<2x8xf32> to vector<2x8x1xf32>
    %105 = vector.broadcast %104 : vector<2x8x1xf32> to vector<2x8x8xf32>
    %106 = arith.subf %102, %105 : vector<2x8x8xf32>
    %107 = math.exp %106 : vector<2x8x8xf32>
    %cst_34 = arith.constant dense<0.000000e+00> : vector<2x8xf32>
    %108 = vector.multi_reduction <add>, %107, %cst_34 [2] : vector<2x8x8xf32> to vector<2x8xf32>
    %109 = vector.shape_cast %108 : vector<2x8xf32> to vector<2x8x1xf32>
    %110 = vector.broadcast %109 : vector<2x8x1xf32> to vector<2x8x8xf32>
    %111 = arith.divf %107, %110 : vector<2x8x8xf32>
    %112 = arith.truncf %111 : vector<2x8x8xf32> to vector<2x8x8xbf16>
    %113 = arith.truncf %98 : vector<2x8x8xf32> to vector<2x8x8xbf16>
    "tpu.trace_start"() <{level = 10 : i32, message = "bqk,bkd->bqd"}> : () -> ()
    %cst_35 = arith.constant dense<0.000000e+00> : vector<2x8x8xf32>
    %114 = tpu.matmul %112, %113, %cst_35 {dimension_numbers = #tpu.dot_dimension_numbers<[2], [1], [1], [2], [0, 0, 0, 1, 1, 2], [0], [0]>} : vector<2x8x8xbf16>, vector<2x8x8xbf16>, vector<2x8x8xf32> -> vector<2x8x8xf32>
    "tpu.trace_stop"() : () -> ()
    %115 = tpu.concatenate %48, %70, %92, %114 in 2 : vector<2x8x8xf32>, vector<2x8x8xf32>, vector<2x8x8xf32>, vector<2x8x8xf32> -> vector<2x8x32xf32>
    %116 = vector.shape_cast %115 : vector<2x8x32xf32> to vector<16x32xf32>
    %117 = arith.truncf %116 : vector<16x32xf32> to vector<16x32xbf16>
    %cst_36 = arith.constant dense<0.000000e+00> : vector<16x32xf32>
    %118 = tpu.matmul %117, %8, %cst_36 {dimension_numbers = #tpu.dot_dimension_numbers<[1], [0], [0], [1], [0, 0, 1, 1], [], []>} : vector<16x32xbf16>, vector<32x32xbf16>, vector<16x32xf32> -> vector<16x32xf32>
    %119 = vector.broadcast %17 : vector<1x32xf32> to vector<16x32xf32>
    %120 = arith.addf %118, %119 : vector<16x32xf32>
    %121 = arith.addf %3, %120 : vector<16x32xf32>
    %cst_37 = arith.constant dense<0.000000e+00> : vector<16xf32>
    %122 = vector.multi_reduction <add>, %121, %cst_37 [1] : vector<16x32xf32> to vector<16xf32>
    %123 = vector.shape_cast %122 : vector<16xf32> to vector<16x1xf32>
    %cst_38 = arith.constant 3.200000e+01 : f32
    %124 = vector.broadcast %cst_38 : f32 to vector<16x1xf32>
    %125 = arith.divf %123, %124 : vector<16x1xf32>
    %126 = vector.broadcast %125 : vector<16x1xf32> to vector<16x32xf32>
    %127 = arith.subf %121, %126 : vector<16x32xf32>
    %128 = arith.mulf %127, %127 : vector<16x32xf32>
    %cst_39 = arith.constant dense<0.000000e+00> : vector<16xf32>
    %129 = vector.multi_reduction <add>, %128, %cst_39 [1] : vector<16x32xf32> to vector<16xf32>
    %130 = vector.shape_cast %129 : vector<16xf32> to vector<16x1xf32>
    %cst_40 = arith.constant 3.200000e+01 : f32
    %131 = vector.broadcast %cst_40 : f32 to vector<16x1xf32>
    %132 = arith.divf %130, %131 : vector<16x1xf32>
    %133 = vector.broadcast %125 : vector<16x1xf32> to vector<16x32xf32>
    %134 = arith.subf %121, %133 : vector<16x32xf32>
    %cst_41 = arith.constant 9.99999997E-7 : f32
    %135 = vector.broadcast %cst_41 : f32 to vector<16x1xf32>
    %136 = arith.addf %132, %135 : vector<16x1xf32>
    %137 = math.rsqrt %136 : vector<16x1xf32>
    %138 = vector.broadcast %137 : vector<16x1xf32> to vector<16x32xf32>
    %139 = arith.mulf %134, %138 : vector<16x32xf32>
    %140 = vector.broadcast %18 : vector<1x32xf32> to vector<16x32xf32>
    %141 = arith.mulf %139, %140 : vector<16x32xf32>
    %142 = vector.broadcast %19 : vector<1x32xf32> to vector<16x32xf32>
    %143 = arith.addf %141, %142 : vector<16x32xf32>
    %144 = arith.truncf %143 : vector<16x32xf32> to vector<16x32xbf16>
    %cst_42 = arith.constant dense<0.000000e+00> : vector<16x64xf32>
    %145 = tpu.matmul %144, %10, %cst_42 {dimension_numbers = #tpu.dot_dimension_numbers<[1], [0], [0], [1], [0, 0, 1, 1], [], []>} : vector<16x32xbf16>, vector<32x64xbf16>, vector<16x64xf32> -> vector<16x64xf32>
    %146 = vector.broadcast %16 : vector<1x64xf32> to vector<16x64xf32>
    %147 = arith.addf %145, %146 : vector<16x64xf32>
    %cst_43 = arith.constant 0.000000e+00 : f32
    %148 = vector.broadcast %cst_43 : f32 to vector<16x64xf32>
    %149 = arith.maximumf %147, %148 : vector<16x64xf32>
    %150 = arith.truncf %149 : vector<16x64xf32> to vector<16x64xbf16>
    %cst_44 = arith.constant dense<0.000000e+00> : vector<16x32xf32>
    %151 = tpu.matmul %150, %12, %cst_44 {dimension_numbers = #tpu.dot_dimension_numbers<[1], [0], [0], [1], [0, 0, 1, 1], [], []>} : vector<16x64xbf16>, vector<64x32xbf16>, vector<16x32xf32> -> vector<16x32xf32>
    %152 = vector.broadcast %20 : vector<1x32xf32> to vector<16x32xf32>
    %153 = arith.addf %151, %152 : vector<16x32xf32>
    %154 = arith.addf %153, %121 : vector<16x32xf32>
    %155 = arith.addf %121, %154 : vector<16x32xf32>
    %cst_45 = arith.constant dense<0.000000e+00> : vector<16xf32>
    %156 = vector.multi_reduction <add>, %155, %cst_45 [1] : vector<16x32xf32> to vector<16xf32>
    %157 = vector.shape_cast %156 : vector<16xf32> to vector<16x1xf32>
    %cst_46 = arith.constant 3.200000e+01 : f32
    %158 = vector.broadcast %cst_46 : f32 to vector<16x1xf32>
    %159 = arith.divf %157, %158 : vector<16x1xf32>
    %160 = vector.broadcast %159 : vector<16x1xf32> to vector<16x32xf32>
    %161 = arith.subf %155, %160 : vector<16x32xf32>
    %162 = arith.mulf %161, %161 : vector<16x32xf32>
    %cst_47 = arith.constant dense<0.000000e+00> : vector<16xf32>
    %163 = vector.multi_reduction <add>, %162, %cst_47 [1] : vector<16x32xf32> to vector<16xf32>
    %164 = vector.shape_cast %163 : vector<16xf32> to vector<16x1xf32>
    %cst_48 = arith.constant 3.200000e+01 : f32
    %165 = vector.broadcast %cst_48 : f32 to vector<16x1xf32>
    %166 = arith.divf %164, %165 : vector<16x1xf32>
    %167 = vector.broadcast %159 : vector<16x1xf32> to vector<16x32xf32>
    %168 = arith.subf %155, %167 : vector<16x32xf32>
    %cst_49 = arith.constant 9.99999997E-7 : f32
    %169 = vector.broadcast %cst_49 : f32 to vector<16x1xf32>
    %170 = arith.addf %166, %169 : vector<16x1xf32>
    %171 = math.rsqrt %170 : vector<16x1xf32>
    %172 = vector.broadcast %171 : vector<16x1xf32> to vector<16x32xf32>
    %173 = arith.mulf %168, %172 : vector<16x32xf32>
    %174 = vector.broadcast %21 : vector<1x32xf32> to vector<16x32xf32>
    %175 = arith.mulf %173, %174 : vector<16x32xf32>
    %176 = vector.broadcast %22 : vector<1x32xf32> to vector<16x32xf32>
    %177 = arith.addf %175, %176 : vector<16x32xf32>
    %c0_50 = arith.constant 0 : index
    %c0_51 = arith.constant 0 : index
    %178 = vector.load %arg8[%c0_50, %c0_51] : memref<16x32xf32, #tpu.memory_space<vmem>>, vector<16x32xf32>
    tpu.vector_store %arg8[%c0_50, %c0_51], %177 {strides = array<i32>} : memref<16x32xf32, #tpu.memory_space<vmem>>, vector<16x32xf32>,
    return
  }
  func.func @transform_0(%arg0: i32) -> (i32, i32) {
    %c0_i32 = arith.constant 0 : i32
    %c0_i32_0 = arith.constant 0 : i32
    %c0_i32_1 = arith.constant 0 : i32
    return %c0_i32, %c0_i32_0 : i32, i32
  }
  func.func @transform_1(%arg0: i32) -> (i32, i32, i32) {
    %c0_i32 = arith.constant 0 : i32
    %c0_i32_0 = arith.constant 0 : i32
    %c0_i32_1 = arith.constant 0 : i32
    %c0_i32_2 = arith.constant 0 : i32
    return %c0_i32, %c0_i32_0, %c0_i32_1 : i32, i32, i32
  }
  func.func @transform_2(%arg0: i32) -> (i32, i32, i32) {
    %c0_i32 = arith.constant 0 : i32
    %c0_i32_0 = arith.constant 0 : i32
    %c0_i32_1 = arith.constant 0 : i32
    return %arg0, %c0_i32, %c0_i32_0 : i32, i32, i32
  }
  func.func @transform_3(%arg0: i32) -> (i32, i32, i32) {
    %c0_i32 = arith.constant 0 : i32
    %c0_i32_0 = arith.constant 0 : i32
    %c0_i32_1 = arith.constant 0 : i32
    return %arg0, %c0_i32, %c0_i32_0 : i32, i32, i32
  }
  func.func @transform_4(%arg0: i32) -> (i32, i32, i32) {
    %c0_i32 = arith.constant 0 : i32
    %c0_i32_0 = arith.constant 0 : i32
    %c0_i32_1 = arith.constant 0 : i32
    return %arg0, %c0_i32, %c0_i32_0 : i32, i32, i32
  }
  func.func @transform_5(%arg0: i32) -> (i32, i32, i32) {
    %c0_i32 = arith.constant 0 : i32
    %c0_i32_0 = arith.constant 0 : i32
    %c0_i32_1 = arith.constant 0 : i32
    return %arg0, %c0_i32, %c0_i32_0 : i32, i32, i32
  }
  func.func @transform_6(%arg0: i32) -> (i32, i32, i32) {
    %c0_i32 = arith.constant 0 : i32
    %c0_i32_0 = arith.constant 0 : i32
    %c0_i32_1 = arith.constant 0 : i32
    return %arg0, %c0_i32, %c0_i32_0 : i32, i32, i32
  }
  func.func @transform_7(%arg0: i32) -> (i32, i32) {
    %c0_i32 = arith.constant 0 : i32
    %c0_i32_0 = arith.constant 0 : i32
    %c0_i32_1 = arith.constant 0 : i32
    return %c0_i32, %c0_i32_0 : i32, i32
  }
}

</mosaic_0001>

<llo_original>
// kernel: tpu_custom_call.1
$region0: #{tpu_custom_call.1}
  #allocation0 [shape = 'u32[]', space=smem, size = 0x4, offset = 0x4, fixed_abs, tag = 'smem constant byte address 0x4 - core index']
  #allocation1 [shape = 'u32[144,128]{1,0:T(1,128)}', space=vmem, size = 0x12000, scoped, tag = 'internal scratch']
  %s0 = inlined_call_operand.hbm [shape: f32[16,32], index: 0, kind: input, shape index: {}]
  %s1 = inlined_call_operand.hbm [shape: f32[2,8,8], index: 1, kind: input, shape index: {}]
  %s2 = inlined_call_operand.vmem [shape: bf16[2,32,96], index: 2, kind: input, shape index: {}]
  %s3 = inlined_call_operand.vmem [shape: bf16[2,32,32], index: 3, kind: input, shape index: {}]
  %s4 = inlined_call_operand.vmem [shape: bf16[2,32,64], index: 4, kind: input, shape index: {}]
  %s5 = inlined_call_operand.vmem [shape: bf16[2,64,32], index: 5, kind: input, shape index: {}]
  %s6 = inlined_call_operand.vmem [shape: f32[2,8,96], index: 6, kind: input, shape index: {}]
  %s7 = inlined_call_operand.hbm [shape: f32[16,32], index: 7, kind: output, shape index: {}]
  %s8 = sld [smem:[#allocation0]]
  $region73: #{tpu_custom_call.1} parent=0
    _
  %s10 = ssub.s32 1, %s8
  %s11 = scalar_select 0, %s10, %s8
  $region1: #{tpu_custom_call.1} parent=0
    #allocation2 [shape = 'u8[8192]{0}', space=vmem, size = 0x2000, scoped, tag = 'input window, operand 0, single buffered']
    #allocation3 [shape = 's32[2]{0}', space=sflag, size = 0x8, scoped, tag = 'scoped memory for tpu_custom_call.1']
    #allocation4 [shape = 's32[2]{0}', space=sflag, size = 0x8, scoped, tag = 'scoped memory for tpu_custom_call.1']
    #allocation5 [shape = 'u8[8192]{0}', space=vmem, size = 0x2000, scoped, tag = 'input window, operand 1, single buffered']
    #allocation6 [shape = 's32[1]{0}', space=sflag, size = 0x4, scoped, tag = 'scoped memory for tpu_custom_call.1']
    #allocation7 [shape = 'u8[8192]{0}', space=vmem, size = 0x2000, scoped, tag = 'output window, operand 0, single buffered']
    %12 = vsyncpa [#allocation3], 0
    %13 = vsyncpa [#allocation6], 0
    %14 = vsyncpa [#allocation4], 0
    loop: start=0, step=1, limit=4
    $region2: #{tpu_custom_call.1} parent=1 // loop_pre_header
      _
    $region3: #{tpu_custom_call.1} parent=1 // loop_header
      %s16 = sphi 0, %s20
      %p17 = scmp.ge.s32.totalorder %s16, 4
      %s24 = sphi 0, %s24
      %s26 = sphi 0, %s24
      %s27 = sphi 0, %s26
      %s41 = sphi 0, %s27
      %s45 = sphi 0, %s45
      %s47 = sphi 0, %s45
      %s48 = sphi 0, %s47
      %s62 = sphi 0, %s48
      %s68 = sphi 0, %s70
      %s71 = sphi 0, %s68
      %s72 = sphi 0, %s71
      %s88 = sphi 0, %s72
      %s94 = sphi 0, %s96
      %s97 = sphi 0, %s94
      %s98 = sphi 0, %s97
      %s114 = sphi 0, %s98
      %s120 = sphi 0, %s122
      %s123 = sphi 0, %s120
      %s124 = sphi 0, %s123
      %s140 = sphi 0, %s124
      %s146 = sphi 0, %s148
      %s149 = sphi 0, %s146
      %s150 = sphi 0, %s149
      %s166 = sphi 0, %s150
      %s172 = sphi 0, %s174
      %s175 = sphi 0, %s172
      %s176 = sphi 0, %s175
      %s192 = sphi 0, %s176
      %s196 = sphi 0, %s196
      %s198 = sphi 0, %s196
      %s199 = sphi 0, %s198
      %s213 = sphi 0, %s199
    $region4: #{tpu_custom_call.1} parent=1 // loop_header_branch
      %19 = sbr.rel (%p17) target = $region8
    $region5: #{tpu_custom_call.1} parent=1 // loop_body
      %s21 = ssub.s32 %s16, 1
      %s22 = ssub.s32 %s16, 2
      %s23 = sadd.s32 %s16, 1
      %s25 = sadd.s32 %s24, 1
      %p28 = scmp.eq.s32.totalorder %s16, 1
      %p29 = scmp.ne.s32.totalorder %s24, %s26
      %p30 = scmp.eq.s32.totalorder %s16, 0
      %p31 = por %p29, %p30
      %p32 = scmp.ne.s32.totalorder %s24, %s26
      %p33 = scmp.eq.s32.totalorder %s21, 1
      %p34 = por %p32, %p33
      %p35 = scmp.ne.s32.totalorder %s26, %s27
      %p36 = scmp.eq.s32.totalorder %s21, 0
      %p37 = por %p35, %p36
      %p38 = scmp.ne.s32.totalorder %s26, %s27
      %p39 = scmp.eq.s32.totalorder %s22, 1
      %p40 = por %p38, %p39
      %p42 = scmp.ne.s32.totalorder %s27, %s41
      %p43 = scmp.eq.s32.totalorder %s22, 0
      %p44 = por %p42, %p43
      %s46 = sadd.s32 %s45, 1
      %p49 = scmp.eq.s32.totalorder %s16, 1
      %p50 = scmp.ne.s32.totalorder %s45, %s47
      %p51 = scmp.eq.s32.totalorder %s16, 0
      %p52 = por %p50, %p51
      %p53 = scmp.ne.s32.totalorder %s45, %s47
      %p54 = scmp.eq.s32.totalorder %s21, 1
      %p55 = por %p53, %p54
      %p56 = scmp.ne.s32.totalorder %s47, %s48
      %p57 = scmp.eq.s32.totalorder %s21, 0
      %p58 = por %p56, %p57
      %p59 = scmp.ne.s32.totalorder %s47, %s48
      %p60 = scmp.eq.s32.totalorder %s22, 1
      %p61 = por %p59, %p60
      %p63 = scmp.ne.s32.totalorder %s48, %s62
      %p64 = scmp.eq.s32.totalorder %s22, 0
      %p65 = por %p63, %p64
      %s66 = ssub.s32 %s16, %s23
      %p67 = scmp.eq.s32.totalorder %s66, 0
      %s69 = sadd.s32 %s68, 1
      %s70 = scalar_select %p67, %s68, %s69
      %p73 = pneg %p67
      %p74 = scmp.eq.s32.totalorder %s16, 1
      %p75 = por %p73, %p74
      %p76 = scmp.ne.s32.totalorder %s68, %s71
      %p77 = scmp.eq.s32.totalorder %s16, 0
      %p78 = por %p76, %p77
      %p79 = scmp.ne.s32.totalorder %s68, %s71
      %p80 = scmp.eq.s32.totalorder %s21, 1
      %p81 = por %p79, %p80
      %p82 = scmp.ne.s32.totalorder %s71, %s72
      %p83 = scmp.eq.s32.totalorder %s21, 0
      %p84 = por %p82, %p83
      %p85 = scmp.ne.s32.totalorder %s71, %s72
      %p86 = scmp.eq.s32.totalorder %s22, 1
      %p87 = por %p85, %p86
      %p89 = scmp.ne.s32.totalorder %s72, %s88
      %p90 = scmp.eq.s32.totalorder %s22, 0
      %p91 = por %p89, %p90
      %s92 = ssub.s32 %s16, %s23
      %p93 = scmp.eq.s32.totalorder %s92, 0
      %s95 = sadd.s32 %s94, 1
      %s96 = scalar_select %p93, %s94, %s95
      %p99 = pneg %p93
      %p100 = scmp.eq.s32.totalorder %s16, 1
      %p101 = por %p99, %p100
      %p102 = scmp.ne.s32.totalorder %s94, %s97
      %p103 = scmp.eq.s32.totalorder %s16, 0
      %p104 = por %p102, %p103
      %p105 = scmp.ne.s32.totalorder %s94, %s97
      %p106 = scmp.eq.s32.totalorder %s21, 1
      %p107 = por %p105, %p106
      %p108 = scmp.ne.s32.totalorder %s97, %s98
      %p109 = scmp.eq.s32.totalorder %s21, 0
      %p110 = por %p108, %p109
      %p111 = scmp.ne.s32.totalorder %s97, %s98
      %p112 = scmp.eq.s32.totalorder %s22, 1
      %p113 = por %p111, %p112
      %p115 = scmp.ne.s32.totalorder %s98, %s114
      %p116 = scmp.eq.s32.totalorder %s22, 0
      %p117 = por %p115, %p116
      %s118 = ssub.s32 %s16, %s23
      %p119 = scmp.eq.s32.totalorder %s118, 0
      %s121 = sadd.s32 %s120, 1
      %s122 = scalar_select %p119, %s120, %s121
      %p125 = pneg %p119
      %p126 = scmp.eq.s32.totalorder %s16, 1
      %p127 = por %p125, %p126
      %p128 = scmp.ne.s32.totalorder %s120, %s123
      %p129 = scmp.eq.s32.totalorder %s16, 0
      %p130 = por %p128, %p129
      %p131 = scmp.ne.s32.totalorder %s120, %s123
      %p132 = scmp.eq.s32.totalorder %s21, 1
      %p133 = por %p131, %p132
      %p134 = scmp.ne.s32.totalorder %s123, %s124
      %p135 = scmp.eq.s32.totalorder %s21, 0
      %p136 = por %p134, %p135
      %p137 = scmp.ne.s32.totalorder %s123, %s124
      %p138 = scmp.eq.s32.totalorder %s22, 1
      %p139 = por %p137, %p138
      %p141 = scmp.ne.s32.totalorder %s124, %s140
      %p142 = scmp.eq.s32.totalorder %s22, 0
      %p143 = por %p141, %p142
      %s144 = ssub.s32 %s16, %s23
      %p145 = scmp.eq.s32.totalorder %s144, 0
      %s147 = sadd.s32 %s146, 1
      %s148 = scalar_select %p145, %s146, %s147
      %p151 = pneg %p145
      %p152 = scmp.eq.s32.totalorder %s16, 1
      %p153 = por %p151, %p152
      %p154 = scmp.ne.s32.totalorder %s146, %s149
      %p155 = scmp.eq.s32.totalorder %s16, 0
      %p156 = por %p154, %p155
      %p157 = scmp.ne.s32.totalorder %s146, %s149
      %p158 = scmp.eq.s32.totalorder %s21, 1
      %p159 = por %p157, %p158
      %p160 = scmp.ne.s32.totalorder %s149, %s150
      %p161 = scmp.eq.s32.totalorder %s21, 0
      %p162 = por %p160, %p161
      %p163 = scmp.ne.s32.totalorder %s149, %s150
      %p164 = scmp.eq.s32.totalorder %s22, 1
      %p165 = por %p163, %p164
      %p167 = scmp.ne.s32.totalorder %s150, %s166
      %p168 = scmp.eq.s32.totalorder %s22, 0
      %p169 = por %p167, %p168
      %s170 = ssub.s32 %s16, %s23
      %p171 = scmp.eq.s32.totalorder %s170, 0
      %s173 = sadd.s32 %s172, 1
      %s174 = scalar_select %p171, %s172, %s173
      %p177 = pneg %p171
      %p178 = scmp.eq.s32.totalorder %s16, 1
      %p179 = por %p177, %p178
      %p180 = scmp.ne.s32.totalorder %s172, %s175
      %p181 = scmp.eq.s32.totalorder %s16, 0
      %p182 = por %p180, %p181
      %p183 = scmp.ne.s32.totalorder %s172, %s175
      %p184 = scmp.eq.s32.totalorder %s21, 1
      %p185 = por %p183, %p184
      %p186 = scmp.ne.s32.totalorder %s175, %s176
      %p187 = scmp.eq.s32.totalorder %s21, 0
      %p188 = por %p186, %p187
      %p189 = scmp.ne.s32.totalorder %s175, %s176
      %p190 = scmp.eq.s32.totalorder %s22, 1
      %p191 = por %p189, %p190
      %p193 = scmp.ne.s32.totalorder %s176, %s192
      %p194 = scmp.eq.s32.totalorder %s22, 0
      %p195 = por %p193, %p194
      %s197 = sadd.s32 %s196, 1
      %p200 = scmp.eq.s32.totalorder %s16, 1
      %p201 = scmp.ne.s32.totalorder %s196, %s198
      %p202 = scmp.eq.s32.totalorder %s16, 0
      %p203 = por %p201, %p202
      %p204 = scmp.ne.s32.totalorder %s196, %s198
      %p205 = scmp.eq.s32.totalorder %s21, 1
      %p206 = por %p204, %p205
      %p207 = scmp.ne.s32.totalorder %s198, %s199
      %p208 = scmp.eq.s32.totalorder %s21, 0
      %p209 = por %p207, %p208
      %p210 = scmp.ne.s32.totalorder %s198, %s199
      %p211 = scmp.eq.s32.totalorder %s22, 1
      %p212 = por %p210, %p211
      %p214 = scmp.ne.s32.totalorder %s199, %s213
      %p215 = scmp.eq.s32.totalorder %s22, 0
      %p216 = por %p214, %p215
      %p217 = scmp.le.s32.totalorder 1, %s16
      %p218 = scmp.lt.s32.totalorder %s16, 3
      %p219 = pnand %p217, %p218
      %p220 = pneg %p219
      // Predicated region
      $region9: #{tpu_custom_call.1} parent=5 // pred_check
        _
      $region10: #{tpu_custom_call.1} parent=5 // pred_check_branch
        %222 = sbr.rel (%p219) target = $region12
      $region11: #{tpu_custom_call.1} parent=5 // pred_region
        %s223 = ssub.s32 %s16, 1
        // Predicated region
        $region13: #{tpu_custom_call.1} parent=11 // pred_check
          %p224 = pneg %p37
        $region14: #{tpu_custom_call.1} parent=11 // pred_check_branch
          %226 = sbr.rel (%p224) target = $region16
        $region15: #{tpu_custom_call.1} parent=11 // pred_region
          %s228 = ssub.s32 256, 256
          %229 = vsyncadd [#allocation3], %s228
          %s230 = sshll.u32 [#allocation2], 4
          %s231 = int_to_ptr.vmem [resolvable:$true] %s230
          %236 = dma.hbm_to_vmem [thread:$0]  %s0, 256, %s231, [#allocation3], 128, 128, 8
        $region16: #{tpu_custom_call.1} parent=11 // pred_fallthru
          _
        // Predicated region
        $region17: #{tpu_custom_call.1} parent=11 // pred_check
          %p237 = pneg %p58
        $region18: #{tpu_custom_call.1} parent=11 // pred_check_branch
          %239 = sbr.rel (%p237) target = $region20
        $region19: #{tpu_custom_call.1} parent=11 // pred_region
          %s241 = ssub.s32 256, 256
          %242 = vsyncadd [#allocation6], %s241
          %s243 = sshll.u32 [#allocation5], 4
          %s244 = int_to_ptr.vmem [resolvable:$true] %s243
          %249 = dma.hbm_to_vmem [thread:$0]  %s1, 256, %s244, [#allocation6], 128, 128, 8
        $region20: #{tpu_custom_call.1} parent=11 // pred_fallthru
          _
      $region12: #{tpu_custom_call.1} parent=5 // pred_fallthru
        _
      %p250 = scmp.lt.s32.totalorder %s16, 2
      // Predicated region
      $region21: #{tpu_custom_call.1} parent=5 // pred_check
        %p251 = pneg %p250
      $region22: #{tpu_custom_call.1} parent=5 // pred_check_branch
        %253 = sbr.rel (%p251) target = $region24
      $region23: #{tpu_custom_call.1} parent=5 // pred_region
        // Predicated region
        $region25: #{tpu_custom_call.1} parent=23 // pred_check
          %p254 = pneg %p78
        $region26: #{tpu_custom_call.1} parent=23 // pred_check_branch
          %256 = sbr.rel (%p254) target = $region28
        $region27: #{tpu_custom_call.1} parent=23 // pred_region
          %p257 = scmp.lt.s32.totalorder %s16, 1
          %s258 = scalar_select %p257, %s16, 1
          %s259 = smul.addr %s258, 4
          %s260 = smul.addr %s259, 4
          %s261 = scalar_lea.vmem %s2, %s260
        $region28: #{tpu_custom_call.1} parent=23 // pred_fallthru
          _
        // Predicated region
        $region29: #{tpu_custom_call.1} parent=23 // pred_check
          %p262 = pneg %p104
        $region30: #{tpu_custom_call.1} parent=23 // pred_check_branch
          %264 = sbr.rel (%p262) target = $region32
        $region31: #{tpu_custom_call.1} parent=23 // pred_region
          %p265 = scmp.lt.s32.totalorder %s16, 1
          %s266 = scalar_select %p265, %s16, 1
          %s267 = smul.addr %s266, 4
          %s268 = smul.addr %s267, 4
          %s269 = scalar_lea.vmem %s3, %s268
        $region32: #{tpu_custom_call.1} parent=23 // pred_fallthru
          _
        // Predicated region
        $region33: #{tpu_custom_call.1} parent=23 // pred_check
          %p270 = pneg %p130
        $region34: #{tpu_custom_call.1} parent=23 // pred_check_branch
          %272 = sbr.rel (%p270) target = $region36
        $region35: #{tpu_custom_call.1} parent=23 // pred_region
          %p273 = scmp.lt.s32.totalorder %s16, 1
          %s274 = scalar_select %p273, %s16, 1
          %s275 = smul.addr %s274, 4
          %s276 = smul.addr %s275, 4
          %s277 = scalar_lea.vmem %s4, %s276
        $region36: #{tpu_custom_call.1} parent=23 // pred_fallthru
          _
        // Predicated region
        $region37: #{tpu_custom_call.1} parent=23 // pred_check
          %p278 = pneg %p156
        $region38: #{tpu_custom_call.1} parent=23 // pred_check_branch
          %280 = sbr.rel (%p278) target = $region40
        $region39: #{tpu_custom_call.1} parent=23 // pred_region
          %p281 = scmp.lt.s32.totalorder %s16, 1
          %s282 = scalar_select %p281, %s16, 1
          %s283 = smul.addr %s282, 8
          %s284 = smul.addr %s283, 4
          %s285 = scalar_lea.vmem %s5, %s284
        $region40: #{tpu_custom_call.1} parent=23 // pred_fallthru
          _
        // Predicated region
        $region41: #{tpu_custom_call.1} parent=23 // pred_check
          %p286 = pneg %p182
        $region42: #{tpu_custom_call.1} parent=23 // pred_check_branch
          %288 = sbr.rel (%p286) target = $region44
        $region43: #{tpu_custom_call.1} parent=23 // pred_region
          %p289 = scmp.lt.s32.totalorder %s16, 1
          %s290 = scalar_select %p289, %s16, 1
          %s291 = smul.addr %s290, 8
          %s292 = scalar_lea.vmem %s6, %s291
        $region44: #{tpu_custom_call.1} parent=23 // pred_fallthru
          _
      $region24: #{tpu_custom_call.1} parent=5 // pred_fallthru
        _
      %p293 = scmp.le.s32.totalorder 1, %s16
      %p294 = scmp.lt.s32.totalorder %s16, 3
      %p295 = pnand %p293, %p294
      %p296 = pneg %p295
      // Predicated region
      $region45: #{tpu_custom_call.1} parent=5 // pred_check
        _
      $region46: #{tpu_custom_call.1} parent=5 // pred_check_branch
        %298 = sbr.rel (%p295) target = $region48
      $region47: #{tpu_custom_call.1} parent=5 // pred_region
        %s299 = ssub.s32 %s16, 1
        // Predicated region
        $region49: #{tpu_custom_call.1} parent=47 // pred_check
          %p300 = pneg %p37
        $region50: #{tpu_custom_call.1} parent=47 // pred_check_branch
          %302 = sbr.rel (%p300) target = $region52
        $region51: #{tpu_custom_call.1} parent=47 // pred_region
          %303 = dma.done [#allocation3], 256
        $region52: #{tpu_custom_call.1} parent=47 // pred_fallthru
          _
        // Predicated region
        $region53: #{tpu_custom_call.1} parent=47 // pred_check
          %p304 = pneg %p58
        $region54: #{tpu_custom_call.1} parent=47 // pred_check_branch
          %306 = sbr.rel (%p304) target = $region56
        $region55: #{tpu_custom_call.1} parent=47 // pred_region
          %307 = dma.done [#allocation6], 256
        $region56: #{tpu_custom_call.1} parent=47 // pred_fallthru
          _
        %p308 = pneg %p37
        %p309 = pneg %p34
        %p310 = pneg %p58
        %p311 = pneg %p55
        %p312 = scmp.lt.s32.totalorder %s21, 1
        %s313 = scalar_select %p312, %s21, 1
        %s314 = smul.addr %s313, 4
        %s315 = smul.addr %s314, 4
        %s316 = scalar_lea.vmem %s2, %s315
        %p317 = pneg %p84
        %p318 = pneg %p81
        %p319 = scmp.lt.s32.totalorder %s21, 1
        %s320 = scalar_select %p319, %s21, 1
        %s321 = smul.addr %s320, 4
        %s322 = smul.addr %s321, 4
        %s323 = scalar_lea.vmem %s3, %s322
        %p324 = pneg %p110
        %p325 = pneg %p107
        %p326 = scmp.lt.s32.totalorder %s21, 1
        %s327 = scalar_select %p326, %s21, 1
        %s328 = smul.addr %s327, 4
        %s329 = smul.addr %s328, 4
        %s330 = scalar_lea.vmem %s4, %s329
        %p331 = pneg %p136
        %p332 = pneg %p133
        %p333 = scmp.lt.s32.totalorder %s21, 1
        %s334 = scalar_select %p333, %s21, 1
        %s335 = smul.addr %s334, 8
        %s336 = smul.addr %s335, 4
        %s337 = scalar_lea.vmem %s5, %s336
        %p338 = pneg %p162
        %p339 = pneg %p159
        %p340 = scmp.lt.s32.totalorder %s21, 1
        %s341 = scalar_select %p340, %s21, 1
        %s342 = smul.addr %s341, 8
        %s343 = scalar_lea.vmem %s6, %s342
        %p344 = pneg %p188
        %p345 = pneg %p185
        %p346 = pneg %p209
        %p347 = pneg %p206
        %p348 = scmp.lt.s32.totalorder %s21, 1
        %s349 = scalar_select %p348, %s21, 1
        %s350 = smul.addr %s349, 4
        %s351 = smul.addr %s350, 4
        %s352 = scalar_lea.vmem %s2, %s351
        %p353 = scmp.lt.s32.totalorder %s21, 1
        %s354 = scalar_select %p353, %s21, 1
        %s355 = smul.addr %s354, 4
        %s356 = smul.addr %s355, 4
        %s357 = scalar_lea.vmem %s3, %s356
        %p358 = scmp.lt.s32.totalorder %s21, 1
        %s359 = scalar_select %p358, %s21, 1
        %s360 = smul.addr %s359, 4
        %s361 = smul.addr %s360, 4
        %s362 = scalar_lea.vmem %s4, %s361
        %p363 = scmp.lt.s32.totalorder %s21, 1
        %s364 = scalar_select %p363, %s21, 1
        %s365 = smul.addr %s364, 8
        %s366 = smul.addr %s365, 4
        %s367 = scalar_lea.vmem %s5, %s366
        %p368 = scmp.lt.s32.totalorder %s21, 1
        %s369 = scalar_select %p368, %s21, 1
        %s370 = smul.addr %s369, 8
        %s371 = scalar_lea.vmem %s6, %s370
        %p373 = scmp.eq.s32.totalorder %s21, 0
        // Predicated region
        $region57: #{tpu_custom_call.1} parent=47 // pred_check
          %p374 = pneg %p373
        $region58: #{tpu_custom_call.1} parent=47 // pred_check_branch
          %376 = sbr.rel (%p374) target = $region60
        $region59: #{tpu_custom_call.1} parent=47 // pred_region
          %v377 = vld [vmem:[#allocation2] sm:$0xff]
          %v378 = vld [vmem:[#allocation2 + $0x8] sm:$0xff]
          %vm379 = vcmask 261120
          %380 = vst.msk [vmem:[#allocation7] sm:$0xff] %vm379, %v377
          %381 = vst.msk [vmem:[#allocation7 + $0x8] sm:$0xff] %vm379, %v378
        $region60: #{tpu_custom_call.1} parent=47 // pred_fallthru
          _
        %v382 = vld [vmem:[#allocation7] sm:$0xff]
        %v383 = vld [vmem:[#allocation7 + $0x8] sm:$0xff]
        %v384 = vld [vmem:[#allocation5] sm:$0xff]
        %v385 = vld [vmem:[#allocation5 + $0x8] sm:$0xff]
        %v386 = vld [vmem:[%s352] sm:$0xf]
        %v387 = vld [vmem:[%s352 + $0x4] sm:$0xf]
        %v388 = vld [vmem:[%s352 + $0x8] sm:$0xf]
        %v389 = vld [vmem:[%s352 + $0xc] sm:$0xf]
        %v390 = vld [vmem:[%s357] sm:$0xf]
        %v391 = vld [vmem:[%s357 + $0x4] sm:$0xf]
        %v392 = vld [vmem:[%s357 + $0x8] sm:$0xf]
        %v393 = vld [vmem:[%s357 + $0xc] sm:$0xf]
        %v394 = vld [vmem:[%s362] sm:$0xf]
        %v395 = vld [vmem:[%s362 + $0x4] sm:$0xf]
        %v396 = vld [vmem:[%s362 + $0x8] sm:$0xf]
        %v397 = vld [vmem:[%s362 + $0xc] sm:$0xf]
        %v398 = vld [vmem:[%s367] sm:$0xf]
        %v399 = vld [vmem:[%s367 + $0x4] sm:$0xf]
        %v400 = vld [vmem:[%s367 + $0x8] sm:$0xf]
        %v401 = vld [vmem:[%s367 + $0xc] sm:$0xf]
        %v402 = vld [vmem:[%s367 + $0x10] sm:$0xf]
        %v403 = vld [vmem:[%s367 + $0x14] sm:$0xf]
        %v404 = vld [vmem:[%s367 + $0x18] sm:$0xf]
        %v405 = vld [vmem:[%s367 + $0x1c] sm:$0xf]
        %v406 = vld [vmem:[%s371] sm:$0xff]
        %v407 = vpack.c.bf16 %v383, %v382
        %v408 = vlaneseq
        %v409 = vshrl.u32 %v408, 7
        %v410 = vsub.s32 0, %v409
        %v411 = vrot.slane %v406, %v410
        %v416 = vunpack.c.l.b16 %v386
        %v417 = vunpack.c.l.b16 %v387
        %v418 = vunpack.c.l.b16 %v388
        %v419 = vunpack.c.l.b16 %v389
        %v420 = vpack.c.b16 %v417, %v416
        %v421 = vpack.c.b16 %v419, %v418
        %vm424 = vcmask 261120
        %v426 = vsel %vm424, %v407, 0
        %428 = vmatprep.subr.bf16.mxu0 0
        %429 = vmatpush1.bf16.msra.mxu0 %v420
        %430 = vmatprep.subr.bf16.mxu0 0
        %431 = vmatpush1.bf16.msra.mxu0 %v421
        %432 = vmatprep.subr.bf16.mxu0 0
        %433 = vmatpush1.bf16.msra.mxu0 0
        %434 = vmatprep.subr.bf16.mxu0 0
        %435 = vmatpush1.bf16.msra.mxu0 0
        %436 = vmatprep.subr.bf16.mxu0 0
        %437 = vmatpush1.bf16.msra.mxu0 0
        %438 = vmatprep.subr.bf16.mxu0 0
        %439 = vmatpush1.bf16.msra.mxu0 0
        %440 = vmatprep.subr.bf16.mxu0 0
        %441 = vmatpush1.bf16.msra.mxu0 0
        %442 = vmatprep.subr.bf16.mxu0 0
        %443 = vmatpush1.bf16.msra.mxu0 0
        %444 = vmatprep.subr.bf16.mxu0 0
        %445 = vmatpush1.bf16.msra.mxu0 0
        %446 = vmatprep.subr.bf16.mxu0 0
        %447 = vmatpush1.bf16.msra.mxu0 0
        %448 = vmatprep.subr.bf16.mxu0 0
        %449 = vmatpush1.bf16.msra.mxu0 0
        %450 = vmatprep.subr.bf16.mxu0 0
        %451 = vmatpush1.bf16.msra.mxu0 0
        %452 = vmatprep.subr.bf16.mxu0 0
        %453 = vmatpush1.bf16.msra.mxu0 0
        %454 = vmatprep.subr.bf16.mxu0 0
        %455 = vmatpush1.bf16.msra.mxu0 0
        %456 = vmatprep.subr.bf16.mxu0 0
        %457 = vmatpush1.bf16.msra.mxu0 0
        %458 = vmatprep.subr.bf16.mxu0 0
        %459 = vmatpush1.bf16.msra.mxu0 0
        %460 = vmatprep.mubr.bf16.mxu0 0
        %461 = vmatmul.mubr.bf16.gmra.mrb[0].mxu0 %v426
        %v462 = vpop.f32.mrb[0].mxu0
        %v463 = vadd.f32 %v411, %v462
        %v464 = vpop.f32.mrb[0].mxu0
        %v465 = vpop.f32.mrb[0].mxu0
        %v466 = vadd.f32 %v411, %v465
        %v467 = vpop.f32.mrb[0].mxu0
        %468 = vdwg.mxu0
        %v469 = vpack.c.bf16 %v463, %v463
        %v470 = vpack.c.bf16 %v466, %v466
        %472 = vrot.lane.b32.xlu0 %v469, 96
        %v473 = vpop.permute.xlu0 %472
        %vm474 = vcmask 64512
        %v476 = vsel %vm474, %v469, 0
        %v479 = vsel %vm474, %v473, 0
        %481 = vmatprep.subr.bf16.mxu0 0
        %482 = vmatpush1.bf16.xpose.msra.mxu0 %v479
        %483 = vmatprep.subr.bf16.mxu0 0
        %484 = vmatpush1.bf16.xpose.msra.mxu0 0
        %485 = vmatprep.subr.bf16.mxu0 0
        %486 = vmatpush1.bf16.xpose.msra.mxu0 0
        %487 = vmatprep.subr.bf16.mxu0 0
        %488 = vmatpush1.bf16.xpose.msra.mxu0 0
        %489 = vmatprep.subr.bf16.mxu0 0
        %490 = vmatpush1.bf16.xpose.msra.mxu0 0
        %491 = vmatprep.subr.bf16.mxu0 0
        %492 = vmatpush1.bf16.xpose.msra.mxu0 0
        %493 = vmatprep.subr.bf16.mxu0 0
        %494 = vmatpush1.bf16.xpose.msra.mxu0 0
        %495 = vmatprep.subr.bf16.mxu0 0
        %496 = vmatpush1.bf16.xpose.msra.mxu0 0
        %497 = vmatprep.subr.bf16.mxu0 0
        %498 = vmatpush1.bf16.xpose.msra.mxu0 0
        %499 = vmatprep.subr.bf16.mxu0 0
        %500 = vmatpush1.bf16.xpose.msra.mxu0 0
        %501 = vmatprep.subr.bf16.mxu0 0
        %502 = vmatpush1.bf16.xpose.msra.mxu0 0
        %503 = vmatprep.subr.bf16.mxu0 0
        %504 = vmatpush1.bf16.xpose.msra.mxu0 0
        %505 = vmatprep.subr.bf16.mxu0 0
        %506 = vmatpush1.bf16.xpose.msra.mxu0 0
        %507 = vmatprep.subr.bf16.mxu0 0
        %508 = vmatpush1.bf16.xpose.msra.mxu0 0
        %509 = vmatprep.subr.bf16.mxu0 0
        %510 = vmatpush1.bf16.xpose.msra.mxu0 0
        %511 = vmatprep.subr.bf16.mxu0 0
        %512 = vmatpush1.bf16.xpose.msra.mxu0 0
        %513 = vmatprep.mubr.bf16.mxu0 0
        %514 = vmatmul.mubr.bf16.gmra.mrb[0].mxu0 %v476
        %v515 = vpop.f32.mrb[0].mxu0
        %v516 = vadd.f32 %v384, %v515
        %v517 = vpop.f32.mrb[0].mxu0
        %v518 = vpop.f32.mrb[0].mxu0
        %v519 = vpop.f32.mrb[0].mxu0
        %520 = vdwg.mxu0
        %522 = vrot.lane.b32.xlu0 %v470, 96
        %v523 = vpop.permute.xlu0 %522
        %v525 = vsel %vm474, %v470, 0
        %v528 = vsel %vm474, %v523, 0
        %530 = vmatprep.subr.bf16.mxu0 0
        %531 = vmatpush1.bf16.xpose.msra.mxu0 %v528
        %532 = vmatprep.subr.bf16.mxu0 0
        %533 = vmatpush1.bf16.xpose.msra.mxu0 0
        %534 = vmatprep.subr.bf16.mxu0 0
        %535 = vmatpush1.bf16.xpose.msra.mxu0 0
        %536 = vmatprep.subr.bf16.mxu0 0
        %537 = vmatpush1.bf16.xpose.msra.mxu0 0
        %538 = vmatprep.subr.bf16.mxu0 0
        %539 = vmatpush1.bf16.xpose.msra.mxu0 0
        %540 = vmatprep.subr.bf16.mxu0 0
        %541 = vmatpush1.bf16.xpose.msra.mxu0 0
        %542 = vmatprep.subr.bf16.mxu0 0
        %543 = vmatpush1.bf16.xpose.msra.mxu0 0
        %544 = vmatprep.subr.bf16.mxu0 0
        %545 = vmatpush1.bf16.xpose.msra.mxu0 0
        %546 = vmatprep.subr.bf16.mxu0 0
        %547 = vmatpush1.bf16.xpose.msra.mxu0 0
        %548 = vmatprep.subr.bf16.mxu0 0
        %549 = vmatpush1.bf16.xpose.msra.mxu0 0
        %550 = vmatprep.subr.bf16.mxu0 0
        %551 = vmatpush1.bf16.xpose.msra.mxu0 0
        %552 = vmatprep.subr.bf16.mxu0 0
        %553 = vmatpush1.bf16.xpose.msra.mxu0 0
        %554 = vmatprep.subr.bf16.mxu0 0
        %555 = vmatpush1.bf16.xpose.msra.mxu0 0
        %556 = vmatprep.subr.bf16.mxu0 0
        %557 = vmatpush1.bf16.xpose.msra.mxu0 0
        %558 = vmatprep.subr.bf16.mxu0 0
        %559 = vmatpush1.bf16.xpose.msra.mxu0 0
        %560 = vmatprep.subr.bf16.mxu0 0
        %561 = vmatpush1.bf16.xpose.msra.mxu0 0
        %562 = vmatprep.mubr.bf16.mxu0 0
        %563 = vmatmul.mubr.bf16.gmra.mrb[0].mxu0 %v525
        %v564 = vpop.f32.mrb[0].mxu0
        %v565 = vadd.f32 %v385, %v564
        %v566 = vpop.f32.mrb[0].mxu0
        %v567 = vpop.f32.mrb[0].mxu0
        %v568 = vpop.f32.mrb[0].mxu0
        %569 = vdwg.mxu0
        %v570 = vsel %vm474, %v516, -inf
        %571 = vmax.xlane.f32.xlu0 %v570
        %v572 = vpop.xlane.xlu0 %571
        %v573 = vsel %vm474, %v565, -inf
        %574 = vmax.xlane.f32.xlu0 %v573
        %v575 = vpop.xlane.xlu0 %574
        %v576 = vsub.f32 %v516, %v572
        %v577 = vsub.f32 %v565, %v575
        %v578 = vmul.f32 %v576, 1.442695
        %v579 = vpow.pop %v578
        %v580 = vmul.f32 %v577, 1.442695
        %v581 = vpow.pop %v580
        %v582 = vsel %vm474, %v579, 0.0
        %583 = vadd.xlane.f32.xlu0 %v582
        %v584 = vpop.xlane.xlu0 %583
        %v585 = vsel %vm474, %v581, 0.0
        %586 = vadd.xlane.f32.xlu0 %v585
        %v587 = vpop.xlane.xlu0 %586
        %v588 = vrcp.pop %v584
        %v589 = vmul.f32 %v579, %v588
        %v590 = vrcp.pop %v587
        %v591 = vmul.f32 %v581, %v590
        %v592 = vpack.c.bf16 %v589, %v589
        %v593 = vpack.c.bf16 %v591, %v591
        %594 = vrot.lane.b32.xlu0 %v469, 64
        %v595 = vpop.permute.xlu0 %594
        %v597 = vsel %vm474, %v592, 0
        %vm599 = vcmask 1043456
        %v601 = vsel %vm599, %v595, 0
        %603 = vmatprep.subr.bf16.mxu0 0
        %604 = vmatpush1.bf16.msra.mxu0 %v601
        %605 = vmatprep.subr.bf16.mxu0 0
        %606 = vmatpush1.bf16.msra.mxu0 0
        %607 = vmatprep.subr.bf16.mxu0 0
        %608 = vmatpush1.bf16.msra.mxu0 0
        %609 = vmatprep.subr.bf16.mxu0 0
        %610 = vmatpush1.bf16.msra.mxu0 0
        %611 = vmatprep.subr.bf16.mxu0 0
        %612 = vmatpush1.bf16.msra.mxu0 0
        %613 = vmatprep.subr.bf16.mxu0 0
        %614 = vmatpush1.bf16.msra.mxu0 0
        %615 = vmatprep.subr.bf16.mxu0 0
        %616 = vmatpush1.bf16.msra.mxu0 0
        %617 = vmatprep.subr.bf16.mxu0 0
        %618 = vmatpush1.bf16.msra.mxu0 0
        %619 = vmatprep.subr.bf16.mxu0 0
        %620 = vmatpush1.bf16.msra.mxu0 0
        %621 = vmatprep.subr.bf16.mxu0 0
        %622 = vmatpush1.bf16.msra.mxu0 0
        %623 = vmatprep.subr.bf16.mxu0 0
        %624 = vmatpush1.bf16.msra.mxu0 0
        %625 = vmatprep.subr.bf16.mxu0 0
        %626 = vmatpush1.bf16.msra.mxu0 0
        %627 = vmatprep.subr.bf16.mxu0 0
        %628 = vmatpush1.bf16.msra.mxu0 0
        %629 = vmatprep.subr.bf16.mxu0 0
        %630 = vmatpush1.bf16.msra.mxu0 0
        %631 = vmatprep.subr.bf16.mxu0 0
        %632 = vmatpush1.bf16.msra.mxu0 0
        %633 = vmatprep.subr.bf16.mxu0 0
        %634 = vmatpush1.bf16.msra.mxu0 0
        %635 = vmatprep.mubr.bf16.mxu0 0
        %636 = vmatmul.mubr.bf16.gmra.mrb[0].mxu0 %v597
        %v637 = vpop.f32.mrb[0].mxu0
        %v638 = vadd.f32 0.0, %v637
        %v639 = vpop.f32.mrb[0].mxu0
        %v640 = vpop.f32.mrb[0].mxu0
        %v641 = vpop.f32.mrb[0].mxu0
        %642 = vdwg.mxu0
        %643 = vrot.lane.b32.xlu0 %v470, 64
        %v644 = vpop.permute.xlu0 %643
        %v646 = vsel %vm474, %v593, 0
        %v649 = vsel %vm599, %v644, 0
        %651 = vmatprep.subr.bf16.mxu0 0
        %652 = vmatpush1.bf16.msra.mxu0 %v649
        %653 = vmatprep.subr.bf16.mxu0 0
        %654 = vmatpush1.bf16.msra.mxu0 0
        %655 = vmatprep.subr.bf16.mxu0 0
        %656 = vmatpush1.bf16.msra.mxu0 0
        %657 = vmatprep.subr.bf16.mxu0 0
        %658 = vmatpush1.bf16.msra.mxu0 0
        %659 = vmatprep.subr.bf16.mxu0 0
        %660 = vmatpush1.bf16.msra.mxu0 0
        %661 = vmatprep.subr.bf16.mxu0 0
        %662 = vmatpush1.bf16.msra.mxu0 0
        %663 = vmatprep.subr.bf16.mxu0 0
        %664 = vmatpush1.bf16.msra.mxu0 0
        %665 = vmatprep.subr.bf16.mxu0 0
        %666 = vmatpush1.bf16.msra.mxu0 0
        %667 = vmatprep.subr.bf16.mxu0 0
        %668 = vmatpush1.bf16.msra.mxu0 0
        %669 = vmatprep.subr.bf16.mxu0 0
        %670 = vmatpush1.bf16.msra.mxu0 0
        %671 = vmatprep.subr.bf16.mxu0 0
        %672 = vmatpush1.bf16.msra.mxu0 0
        %673 = vmatprep.subr.bf16.mxu0 0
        %674 = vmatpush1.bf16.msra.mxu0 0
        %675 = vmatprep.subr.bf16.mxu0 0
        %676 = vmatpush1.bf16.msra.mxu0 0
        %677 = vmatprep.subr.bf16.mxu0 0
        %678 = vmatpush1.bf16.msra.mxu0 0
        %679 = vmatprep.subr.bf16.mxu0 0
        %680 = vmatpush1.bf16.msra.mxu0 0
        %681 = vmatprep.subr.bf16.mxu0 0
        %682 = vmatpush1.bf16.msra.mxu0 0
        %683 = vmatprep.mubr.bf16.mxu0 0
        %684 = vmatmul.mubr.bf16.gmra.mrb[0].mxu0 %v646
        %v685 = vpop.f32.mrb[0].mxu0
        %v686 = vadd.f32 0.0, %v685
        %v687 = vpop.f32.mrb[0].mxu0
        %v688 = vpop.f32.mrb[0].mxu0
        %v689 = vpop.f32.mrb[0].mxu0
        %690 = vdwg.mxu0
        %691 = vrot.lane.b32.xlu0 %v469, 120
        %v692 = vpop.permute.xlu0 %691
        %693 = vrot.lane.b32.xlu0 %v469, 88
        %v694 = vpop.permute.xlu0 %693
        %v696 = vsel %vm474, %v692, 0
        %v699 = vsel %vm474, %v694, 0
        %701 = vmatprep.subr.bf16.mxu0 0
        %702 = vmatpush1.bf16.xpose.msra.mxu0 %v699
        %703 = vmatprep.subr.bf16.mxu0 0
        %704 = vmatpush1.bf16.xpose.msra.mxu0 0
        %705 = vmatprep.subr.bf16.mxu0 0
        %706 = vmatpush1.bf16.xpose.msra.mxu0 0
        %707 = vmatprep.subr.bf16.mxu0 0
        %708 = vmatpush1.bf16.xpose.msra.mxu0 0
        %709 = vmatprep.subr.bf16.mxu0 0
        %710 = vmatpush1.bf16.xpose.msra.mxu0 0
        %711 = vmatprep.subr.bf16.mxu0 0
        %712 = vmatpush1.bf16.xpose.msra.mxu0 0
        %713 = vmatprep.subr.bf16.mxu0 0
        %714 = vmatpush1.bf16.xpose.msra.mxu0 0
        %715 = vmatprep.subr.bf16.mxu0 0
        %716 = vmatpush1.bf16.xpose.msra.mxu0 0
        %717 = vmatprep.subr.bf16.mxu0 0
        %718 = vmatpush1.bf16.xpose.msra.mxu0 0
        %719 = vmatprep.subr.bf16.mxu0 0
        %720 = vmatpush1.bf16.xpose.msra.mxu0 0
        %721 = vmatprep.subr.bf16.mxu0 0
        %722 = vmatpush1.bf16.xpose.msra.mxu0 0
        %723 = vmatprep.subr.bf16.mxu0 0
        %724 = vmatpush1.bf16.xpose.msra.mxu0 0
        %725 = vmatprep.subr.bf16.mxu0 0
        %726 = vmatpush1.bf16.xpose.msra.mxu0 0
        %727 = vmatprep.subr.bf16.mxu0 0
        %728 = vmatpush1.bf16.xpose.msra.mxu0 0
        %729 = vmatprep.subr.bf16.mxu0 0
        %730 = vmatpush1.bf16.xpose.msra.mxu0 0
        %731 = vmatprep.subr.bf16.mxu0 0
        %732 = vmatpush1.bf16.xpose.msra.mxu0 0
        %733 = vmatprep.mubr.bf16.mxu0 0
        %734 = vmatmul.mubr.bf16.gmra.mrb[0].mxu0 %v696
        %v735 = vpop.f32.mrb[0].mxu0
        %v736 = vadd.f32 %v384, %v735
        %v737 = vpop.f32.mrb[0].mxu0
        %v738 = vpop.f32.mrb[0].mxu0
        %v739 = vpop.f32.mrb[0].mxu0
        %740 = vdwg.mxu0
        %741 = vrot.lane.b32.xlu0 %v470, 120
        %v742 = vpop.permute.xlu0 %741
        %743 = vrot.lane.b32.xlu0 %v470, 88
        %v744 = vpop.permute.xlu0 %743
        %v746 = vsel %vm474, %v742, 0
        %v749 = vsel %vm474, %v744, 0
        %751 = vmatprep.subr.bf16.mxu0 0
        %752 = vmatpush1.bf16.xpose.msra.mxu0 %v749
        %753 = vmatprep.subr.bf16.mxu0 0
        %754 = vmatpush1.bf16.xpose.msra.mxu0 0
        %755 = vmatprep.subr.bf16.mxu0 0
        %756 = vmatpush1.bf16.xpose.msra.mxu0 0
        %757 = vmatprep.subr.bf16.mxu0 0
        %758 = vmatpush1.bf16.xpose.msra.mxu0 0
        %759 = vmatprep.subr.bf16.mxu0 0
        %760 = vmatpush1.bf16.xpose.msra.mxu0 0
        %761 = vmatprep.subr.bf16.mxu0 0
        %762 = vmatpush1.bf16.xpose.msra.mxu0 0
        %763 = vmatprep.subr.bf16.mxu0 0
        %764 = vmatpush1.bf16.xpose.msra.mxu0 0
        %765 = vmatprep.subr.bf16.mxu0 0
        %766 = vmatpush1.bf16.xpose.msra.mxu0 0
        %767 = vmatprep.subr.bf16.mxu0 0
        %768 = vmatpush1.bf16.xpose.msra.mxu0 0
        %769 = vmatprep.subr.bf16.mxu0 0
        %770 = vmatpush1.bf16.xpose.msra.mxu0 0
        %771 = vmatprep.subr.bf16.mxu0 0
        %772 = vmatpush1.bf16.xpose.msra.mxu0 0
        %773 = vmatprep.subr.bf16.mxu0 0
        %774 = vmatpush1.bf16.xpose.msra.mxu0 0
        %775 = vmatprep.subr.bf16.mxu0 0
        %776 = vmatpush1.bf16.xpose.msra.mxu0 0
        %777 = vmatprep.subr.bf16.mxu0 0
        %778 = vmatpush1.bf16.xpose.msra.mxu0 0
        %779 = vmatprep.subr.bf16.mxu0 0
        %780 = vmatpush1.bf16.xpose.msra.mxu0 0
        %781 = vmatprep.subr.bf16.mxu0 0
        %782 = vmatpush1.bf16.xpose.msra.mxu0 0
        %783 = vmatprep.mubr.bf16.mxu0 0
        %784 = vmatmul.mubr.bf16.gmra.mrb[0].mxu0 %v746
        %v785 = vpop.f32.mrb[0].mxu0
        %v786 = vadd.f32 %v385, %v785
        %v787 = vpop.f32.mrb[0].mxu0
        %v788 = vpop.f32.mrb[0].mxu0
        %v789 = vpop.f32.mrb[0].mxu0
        %790 = vdwg.mxu0
        %v791 = vsel %vm474, %v736, -inf
        %792 = vmax.xlane.f32.xlu0 %v791
        %v793 = vpop.xlane.xlu0 %792
        %v794 = vsel %vm474, %v786, -inf
        %795 = vmax.xlane.f32.xlu0 %v794
        %v796 = vpop.xlane.xlu0 %795
        %v797 = vsub.f32 %v736, %v793
        %v798 = vsub.f32 %v786, %v796
        %v799 = vmul.f32 %v797, 1.442695
        %v800 = vpow.pop %v799
        %v801 = vmul.f32 %v798, 1.442695
        %v802 = vpow.pop %v801
        %v803 = vsel %vm474, %v800, 0.0
        %804 = vadd.xlane.f32.xlu0 %v803
        %v805 = vpop.xlane.xlu0 %804
        %v806 = vsel %vm474, %v802, 0.0
        %807 = vadd.xlane.f32.xlu0 %v806
        %v808 = vpop.xlane.xlu0 %807
        %v809 = vrcp.pop %v805
        %v810 = vmul.f32 %v800, %v809
        %v811 = vrcp.pop %v808
        %v812 = vmul.f32 %v802, %v811
        %v813 = vpack.c.bf16 %v810, %v810
        %v814 = vpack.c.bf16 %v812, %v812
        %815 = vrot.lane.b32.xlu0 %v469, 56
        %v816 = vpop.permute.xlu0 %815
        %v818 = vsel %vm474, %v813, 0
        %v821 = vsel %vm599, %v816, 0
        %823 = vmatprep.subr.bf16.mxu0 0
        %824 = vmatpush1.bf16.msra.mxu0 %v821
        %825 = vmatprep.subr.bf16.mxu0 0
        %826 = vmatpush1.bf16.msra.mxu0 0
        %827 = vmatprep.subr.bf16.mxu0 0
        %828 = vmatpush1.bf16.msra.mxu0 0
        %829 = vmatprep.subr.bf16.mxu0 0
        %830 = vmatpush1.bf16.msra.mxu0 0
        %831 = vmatprep.subr.bf16.mxu0 0
        %832 = vmatpush1.bf16.msra.mxu0 0
        %833 = vmatprep.subr.bf16.mxu0 0
        %834 = vmatpush1.bf16.msra.mxu0 0
        %835 = vmatprep.subr.bf16.mxu0 0
        %836 = vmatpush1.bf16.msra.mxu0 0
        %837 = vmatprep.subr.bf16.mxu0 0
        %838 = vmatpush1.bf16.msra.mxu0 0
        %839 = vmatprep.subr.bf16.mxu0 0
        %840 = vmatpush1.bf16.msra.mxu0 0
        %841 = vmatprep.subr.bf16.mxu0 0
        %842 = vmatpush1.bf16.msra.mxu0 0
        %843 = vmatprep.subr.bf16.mxu0 0
        %844 = vmatpush1.bf16.msra.mxu0 0
        %845 = vmatprep.subr.bf16.mxu0 0
        %846 = vmatpush1.bf16.msra.mxu0 0
        %847 = vmatprep.subr.bf16.mxu0 0
        %848 = vmatpush1.bf16.msra.mxu0 0
        %849 = vmatprep.subr.bf16.mxu0 0
        %850 = vmatpush1.bf16.msra.mxu0 0
        %851 = vmatprep.subr.bf16.mxu0 0
        %852 = vmatpush1.bf16.msra.mxu0 0
        %853 = vmatprep.subr.bf16.mxu0 0
        %854 = vmatpush1.bf16.msra.mxu0 0
        %855 = vmatprep.mubr.bf16.mxu0 0
        %856 = vmatmul.mubr.bf16.gmra.mrb[0].mxu0 %v818
        %v857 = vpop.f32.mrb[0].mxu0
        %v858 = vadd.f32 0.0, %v857
        %v859 = vpop.f32.mrb[0].mxu0
        %v860 = vpop.f32.mrb[0].mxu0
        %v861 = vpop.f32.mrb[0].mxu0
        %862 = vdwg.mxu0
        %863 = vrot.lane.b32.xlu0 %v470, 56
        %v864 = vpop.permute.xlu0 %863
        %v866 = vsel %vm474, %v814, 0
        %v869 = vsel %vm599, %v864, 0
        %871 = vmatprep.subr.bf16.mxu0 0
        %872 = vmatpush1.bf16.msra.mxu0 %v869
        %873 = vmatprep.subr.bf16.mxu0 0
        %874 = vmatpush1.bf16.msra.mxu0 0
        %875 = vmatprep.subr.bf16.mxu0 0
        %876 = vmatpush1.bf16.msra.mxu0 0
        %877 = vmatprep.subr.bf16.mxu0 0
        %878 = vmatpush1.bf16.msra.mxu0 0
        %879 = vmatprep.subr.bf16.mxu0 0
        %880 = vmatpush1.bf16.msra.mxu0 0
        %881 = vmatprep.subr.bf16.mxu0 0
        %882 = vmatpush1.bf16.msra.mxu0 0
        %883 = vmatprep.subr.bf16.mxu0 0
        %884 = vmatpush1.bf16.msra.mxu0 0
        %885 = vmatprep.subr.bf16.mxu0 0
        %886 = vmatpush1.bf16.msra.mxu0 0
        %887 = vmatprep.subr.bf16.mxu0 0
        %888 = vmatpush1.bf16.msra.mxu0 0
        %889 = vmatprep.subr.bf16.mxu0 0
        %890 = vmatpush1.bf16.msra.mxu0 0
        %891 = vmatprep.subr.bf16.mxu0 0
        %892 = vmatpush1.bf16.msra.mxu0 0
        %893 = vmatprep.subr.bf16.mxu0 0
        %894 = vmatpush1.bf16.msra.mxu0 0
        %895 = vmatprep.subr.bf16.mxu0 0
        %896 = vmatpush1.bf16.msra.mxu0 0
        %897 = vmatprep.subr.bf16.mxu0 0
        %898 = vmatpush1.bf16.msra.mxu0 0
        %899 = vmatprep.subr.bf16.mxu0 0
        %900 = vmatpush1.bf16.msra.mxu0 0
        %901 = vmatprep.subr.bf16.mxu0 0
        %902 = vmatpush1.bf16.msra.mxu0 0
        %903 = vmatprep.mubr.bf16.mxu0 0
        %904 = vmatmul.mubr.bf16.gmra.mrb[0].mxu0 %v866
        %v905 = vpop.f32.mrb[0].mxu0
        %v906 = vadd.f32 0.0, %v905
        %v907 = vpop.f32.mrb[0].mxu0
        %v908 = vpop.f32.mrb[0].mxu0
        %v909 = vpop.f32.mrb[0].mxu0
        %910 = vdwg.mxu0
        %911 = vrot.lane.b32.xlu0 %v469, 112
        %v912 = vpop.permute.xlu0 %911
        %913 = vrot.lane.b32.xlu0 %v469, 80
        %v914 = vpop.permute.xlu0 %913
        %v916 = vsel %vm474, %v912, 0
        %v919 = vsel %vm474, %v914, 0
        %921 = vmatprep.subr.bf16.mxu0 0
        %922 = vmatpush1.bf16.xpose.msra.mxu0 %v919
        %923 = vmatprep.subr.bf16.mxu0 0
        %924 = vmatpush1.bf16.xpose.msra.mxu0 0
        %925 = vmatprep.subr.bf16.mxu0 0
        %926 = vmatpush1.bf16.xpose.msra.mxu0 0
        %927 = vmatprep.subr.bf16.mxu0 0
        %928 = vmatpush1.bf16.xpose.msra.mxu0 0
        %929 = vmatprep.subr.bf16.mxu0 0
        %930 = vmatpush1.bf16.xpose.msra.mxu0 0
        %931 = vmatprep.subr.bf16.mxu0 0
        %932 = vmatpush1.bf16.xpose.msra.mxu0 0
        %933 = vmatprep.subr.bf16.mxu0 0
        %934 = vmatpush1.bf16.xpose.msra.mxu0 0
        %935 = vmatprep.subr.bf16.mxu0 0
        %936 = vmatpush1.bf16.xpose.msra.mxu0 0
        %937 = vmatprep.subr.bf16.mxu0 0
        %938 = vmatpush1.bf16.xpose.msra.mxu0 0
        %939 = vmatprep.subr.bf16.mxu0 0
        %940 = vmatpush1.bf16.xpose.msra.mxu0 0
        %941 = vmatprep.subr.bf16.mxu0 0
        %942 = vmatpush1.bf16.xpose.msra.mxu0 0
        %943 = vmatprep.subr.bf16.mxu0 0
        %944 = vmatpush1.bf16.xpose.msra.mxu0 0
        %945 = vmatprep.subr.bf16.mxu0 0
        %946 = vmatpush1.bf16.xpose.msra.mxu0 0
        %947 = vmatprep.subr.bf16.mxu0 0
        %948 = vmatpush1.bf16.xpose.msra.mxu0 0
        %949 = vmatprep.subr.bf16.mxu0 0
        %950 = vmatpush1.bf16.xpose.msra.mxu0 0
        %951 = vmatprep.subr.bf16.mxu0 0
        %952 = vmatpush1.bf16.xpose.msra.mxu0 0
        %953 = vmatprep.mubr.bf16.mxu0 0
        %954 = vmatmul.mubr.bf16.gmra.mrb[0].mxu0 %v916
        %v955 = vpop.f32.mrb[0].mxu0
        %v956 = vadd.f32 %v384, %v955
        %v957 = vpop.f32.mrb[0].mxu0
        %v958 = vpop.f32.mrb[0].mxu0
        %v959 = vpop.f32.mrb[0].mxu0
        %960 = vdwg.mxu0
        %961 = vrot.lane.b32.xlu0 %v470, 112
        %v962 = vpop.permute.xlu0 %961
        %963 = vrot.lane.b32.xlu0 %v470, 80
        %v964 = vpop.permute.xlu0 %963
        %v966 = vsel %vm474, %v962, 0
        %v969 = vsel %vm474, %v964, 0
        %971 = vmatprep.subr.bf16.mxu0 0
        %972 = vmatpush1.bf16.xpose.msra.mxu0 %v969
        %973 = vmatprep.subr.bf16.mxu0 0
        %974 = vmatpush1.bf16.xpose.msra.mxu0 0
        %975 = vmatprep.subr.bf16.mxu0 0
        %976 = vmatpush1.bf16.xpose.msra.mxu0 0
        %977 = vmatprep.subr.bf16.mxu0 0
        %978 = vmatpush1.bf16.xpose.msra.mxu0 0
        %979 = vmatprep.subr.bf16.mxu0 0
        %980 = vmatpush1.bf16.xpose.msra.mxu0 0
        %981 = vmatprep.subr.bf16.mxu0 0
        %982 = vmatpush1.bf16.xpose.msra.mxu0 0
        %983 = vmatprep.subr.bf16.mxu0 0
        %984 = vmatpush1.bf16.xpose.msra.mxu0 0
        %985 = vmatprep.subr.bf16.mxu0 0
        %986 = vmatpush1.bf16.xpose.msra.mxu0 0
        %987 = vmatprep.subr.bf16.mxu0 0
        %988 = vmatpush1.bf16.xpose.msra.mxu0 0
        %989 = vmatprep.subr.bf16.mxu0 0
        %990 = vmatpush1.bf16.xpose.msra.mxu0 0
        %991 = vmatprep.subr.bf16.mxu0 0
        %992 = vmatpush1.bf16.xpose.msra.mxu0 0
        %993 = vmatprep.subr.bf16.mxu0 0
        %994 = vmatpush1.bf16.xpose.msra.mxu0 0
        %995 = vmatprep.subr.bf16.mxu0 0
        %996 = vmatpush1.bf16.xpose.msra.mxu0 0
        %997 = vmatprep.subr.bf16.mxu0 0
        %998 = vmatpush1.bf16.xpose.msra.mxu0 0
        %999 = vmatprep.subr.bf16.mxu0 0
        %1000 = vmatpush1.bf16.xpose.msra.mxu0 0
        %1001 = vmatprep.subr.bf16.mxu0 0
        %1002 = vmatpush1.bf16.xpose.msra.mxu0 0
        %1003 = vmatprep.mubr.bf16.mxu0 0
        %1004 = vmatmul.mubr.bf16.gmra.mrb[0].mxu0 %v966
        %v1005 = vpop.f32.mrb[0].mxu0
        %v1006 = vadd.f32 %v385, %v1005
        %v1007 = vpop.f32.mrb[0].mxu0
        %v1008 = vpop.f32.mrb[0].mxu0
        %v1009 = vpop.f32.mrb[0].mxu0
        %1010 = vdwg.mxu0
        %v1011 = vsel %vm474, %v956, -inf
        %1012 = vmax.xlane.f32.xlu0 %v1011
        %v1013 = vpop.xlane.xlu0 %1012
        %v1014 = vsel %vm474, %v1006, -inf
        %1015 = vmax.xlane.f32.xlu0 %v1014
        %v1016 = vpop.xlane.xlu0 %1015
        %v1017 = vsub.f32 %v956, %v1013
        %v1018 = vsub.f32 %v1006, %v1016
        %v1019 = vmul.f32 %v1017, 1.442695
        %v1020 = vpow.pop %v1019
        %v1021 = vmul.f32 %v1018, 1.442695
        %v1022 = vpow.pop %v1021
        %v1023 = vsel %vm474, %v1020, 0.0
        %1024 = vadd.xlane.f32.xlu0 %v1023
        %v1025 = vpop.xlane.xlu0 %1024
        %v1026 = vsel %vm474, %v1022, 0.0
        %1027 = vadd.xlane.f32.xlu0 %v1026
        %v1028 = vpop.xlane.xlu0 %1027
        %v1029 = vrcp.pop %v1025
        %v1030 = vmul.f32 %v1020, %v1029
        %v1031 = vrcp.pop %v1028
        %v1032 = vmul.f32 %v1022, %v1031
        %v1033 = vpack.c.bf16 %v1030, %v1030
        %v1034 = vpack.c.bf16 %v1032, %v1032
        %1035 = vrot.lane.b32.xlu0 %v469, 48
        %v1036 = vpop.permute.xlu0 %1035
        %v1038 = vsel %vm474, %v1033, 0
        %v1041 = vsel %vm599, %v1036, 0
        %1043 = vmatprep.subr.bf16.mxu0 0
        %1044 = vmatpush1.bf16.msra.mxu0 %v1041
        %1045 = vmatprep.subr.bf16.mxu0 0
        %1046 = vmatpush1.bf16.msra.mxu0 0
        %1047 = vmatprep.subr.bf16.mxu0 0
        %1048 = vmatpush1.bf16.msra.mxu0 0
        %1049 = vmatprep.subr.bf16.mxu0 0
        %1050 = vmatpush1.bf16.msra.mxu0 0
        %1051 = vmatprep.subr.bf16.mxu0 0
        %1052 = vmatpush1.bf16.msra.mxu0 0
        %1053 = vmatprep.subr.bf16.mxu0 0
        %1054 = vmatpush1.bf16.msra.mxu0 0
        %1055 = vmatprep.subr.bf16.mxu0 0
        %1056 = vmatpush1.bf16.msra.mxu0 0
        %1057 = vmatprep.subr.bf16.mxu0 0
        %1058 = vmatpush1.bf16.msra.mxu0 0
        %1059 = vmatprep.subr.bf16.mxu0 0
        %1060 = vmatpush1.bf16.msra.mxu0 0
        %1061 = vmatprep.subr.bf16.mxu0 0
        %1062 = vmatpush1.bf16.msra.mxu0 0
        %1063 = vmatprep.subr.bf16.mxu0 0
        %1064 = vmatpush1.bf16.msra.mxu0 0
        %1065 = vmatprep.subr.bf16.mxu0 0
        %1066 = vmatpush1.bf16.msra.mxu0 0
        %1067 = vmatprep.subr.bf16.mxu0 0
        %1068 = vmatpush1.bf16.msra.mxu0 0
        %1069 = vmatprep.subr.bf16.mxu0 0
        %1070 = vmatpush1.bf16.msra.mxu0 0
        %1071 = vmatprep.subr.bf16.mxu0 0
        %1072 = vmatpush1.bf16.msra.mxu0 0
        %1073 = vmatprep.subr.bf16.mxu0 0
        %1074 = vmatpush1.bf16.msra.mxu0 0
        %1075 = vmatprep.mubr.bf16.mxu0 0
        %1076 = vmatmul.mubr.bf16.gmra.mrb[0].mxu0 %v1038
        %v1077 = vpop.f32.mrb[0].mxu0
        %v1078 = vadd.f32 0.0, %v1077
        %v1079 = vpop.f32.mrb[0].mxu0
        %v1080 = vpop.f32.mrb[0].mxu0
        %v1081 = vpop.f32.mrb[0].mxu0
        %1082 = vdwg.mxu0
        %1083 = vrot.lane.b32.xlu0 %v470, 48
        %v1084 = vpop.permute.xlu0 %1083
        %v1086 = vsel %vm474, %v1034, 0
        %v1089 = vsel %vm599, %v1084, 0
        %1091 = vmatprep.subr.bf16.mxu0 0
        %1092 = vmatpush1.bf16.msra.mxu0 %v1089
        %1093 = vmatprep.subr.bf16.mxu0 0
        %1094 = vmatpush1.bf16.msra.mxu0 0
        %1095 = vmatprep.subr.bf16.mxu0 0
        %1096 = vmatpush1.bf16.msra.mxu0 0
        %1097 = vmatprep.subr.bf16.mxu0 0
        %1098 = vmatpush1.bf16.msra.mxu0 0
        %1099 = vmatprep.subr.bf16.mxu0 0
        %1100 = vmatpush1.bf16.msra.mxu0 0
        %1101 = vmatprep.subr.bf16.mxu0 0
        %1102 = vmatpush1.bf16.msra.mxu0 0
        %1103 = vmatprep.subr.bf16.mxu0 0
        %1104 = vmatpush1.bf16.msra.mxu0 0
        %1105 = vmatprep.subr.bf16.mxu0 0
        %1106 = vmatpush1.bf16.msra.mxu0 0
        %1107 = vmatprep.subr.bf16.mxu0 0
        %1108 = vmatpush1.bf16.msra.mxu0 0
        %1109 = vmatprep.subr.bf16.mxu0 0
        %1110 = vmatpush1.bf16.msra.mxu0 0
        %1111 = vmatprep.subr.bf16.mxu0 0
        %1112 = vmatpush1.bf16.msra.mxu0 0
        %1113 = vmatprep.subr.bf16.mxu0 0
        %1114 = vmatpush1.bf16.msra.mxu0 0
        %1115 = vmatprep.subr.bf16.mxu0 0
        %1116 = vmatpush1.bf16.msra.mxu0 0
        %1117 = vmatprep.subr.bf16.mxu0 0
        %1118 = vmatpush1.bf16.msra.mxu0 0
        %1119 = vmatprep.subr.bf16.mxu0 0
        %1120 = vmatpush1.bf16.msra.mxu0 0
        %1121 = vmatprep.subr.bf16.mxu0 0
        %1122 = vmatpush1.bf16.msra.mxu0 0
        %1123 = vmatprep.mubr.bf16.mxu0 0
        %1124 = vmatmul.mubr.bf16.gmra.mrb[0].mxu0 %v1086
        %v1125 = vpop.f32.mrb[0].mxu0
        %v1126 = vadd.f32 0.0, %v1125
        %v1127 = vpop.f32.mrb[0].mxu0
        %v1128 = vpop.f32.mrb[0].mxu0
        %v1129 = vpop.f32.mrb[0].mxu0
        %1130 = vdwg.mxu0
        %1131 = vrot.lane.b32.xlu0 %v469, 104
        %v1132 = vpop.permute.xlu0 %1131
        %1133 = vrot.lane.b32.xlu0 %v469, 72
        %v1134 = vpop.permute.xlu0 %1133
        %v1136 = vsel %vm474, %v1132, 0
        %v1139 = vsel %vm474, %v1134, 0
        %1141 = vmatprep.subr.bf16.mxu0 0
        %1142 = vmatpush1.bf16.xpose.msra.mxu0 %v1139
        %1143 = vmatprep.subr.bf16.mxu0 0
        %1144 = vmatpush1.bf16.xpose.msra.mxu0 0
        %1145 = vmatprep.subr.bf16.mxu0 0
        %1146 = vmatpush1.bf16.xpose.msra.mxu0 0
        %1147 = vmatprep.subr.bf16.mxu0 0
        %1148 = vmatpush1.bf16.xpose.msra.mxu0 0
        %1149 = vmatprep.subr.bf16.mxu0 0
        %1150 = vmatpush1.bf16.xpose.msra.mxu0 0
        %1151 = vmatprep.subr.bf16.mxu0 0
        %1152 = vmatpush1.bf16.xpose.msra.mxu0 0
        %1153 = vmatprep.subr.bf16.mxu0 0
        %1154 = vmatpush1.bf16.xpose.msra.mxu0 0
        %1155 = vmatprep.subr.bf16.mxu0 0
        %1156 = vmatpush1.bf16.xpose.msra.mxu0 0
        %1157 = vmatprep.subr.bf16.mxu0 0
        %1158 = vmatpush1.bf16.xpose.msra.mxu0 0
        %1159 = vmatprep.subr.bf16.mxu0 0
        %1160 = vmatpush1.bf16.xpose.msra.mxu0 0
        %1161 = vmatprep.subr.bf16.mxu0 0
        %1162 = vmatpush1.bf16.xpose.msra.mxu0 0
        %1163 = vmatprep.subr.bf16.mxu0 0
        %1164 = vmatpush1.bf16.xpose.msra.mxu0 0
        %1165 = vmatprep.subr.bf16.mxu0 0
        %1166 = vmatpush1.bf16.xpose.msra.mxu0 0
        %1167 = vmatprep.subr.bf16.mxu0 0
        %1168 = vmatpush1.bf16.xpose.msra.mxu0 0
        %1169 = vmatprep.subr.bf16.mxu0 0
        %1170 = vmatpush1.bf16.xpose.msra.mxu0 0
        %1171 = vmatprep.subr.bf16.mxu0 0
        %1172 = vmatpush1.bf16.xpose.msra.mxu0 0
        %1173 = vmatprep.mubr.bf16.mxu0 0
        %1174 = vmatmul.mubr.bf16.gmra.mrb[0].mxu0 %v1136
        %v1175 = vpop.f32.mrb[0].mxu0
        %v1176 = vadd.f32 %v384, %v1175
        %v1177 = vpop.f32.mrb[0].mxu0
        %v1178 = vpop.f32.mrb[0].mxu0
        %v1179 = vpop.f32.mrb[0].mxu0
        %1180 = vdwg.mxu0
        %1181 = vrot.lane.b32.xlu0 %v470, 104
        %v1182 = vpop.permute.xlu0 %1181
        %1183 = vrot.lane.b32.xlu0 %v470, 72
        %v1184 = vpop.permute.xlu0 %1183
        %v1186 = vsel %vm474, %v1182, 0
        %v1189 = vsel %vm474, %v1184, 0
        %1191 = vmatprep.subr.bf16.mxu0 0
        %1192 = vmatpush1.bf16.xpose.msra.mxu0 %v1189
        %1193 = vmatprep.subr.bf16.mxu0 0
        %1194 = vmatpush1.bf16.xpose.msra.mxu0 0
        %1195 = vmatprep.subr.bf16.mxu0 0
        %1196 = vmatpush1.bf16.xpose.msra.mxu0 0
        %1197 = vmatprep.subr.bf16.mxu0 0
        %1198 = vmatpush1.bf16.xpose.msra.mxu0 0
        %1199 = vmatprep.subr.bf16.mxu0 0
        %1200 = vmatpush1.bf16.xpose.msra.mxu0 0
        %1201 = vmatprep.subr.bf16.mxu0 0
        %1202 = vmatpush1.bf16.xpose.msra.mxu0 0
        %1203 = vmatprep.subr.bf16.mxu0 0
        %1204 = vmatpush1.bf16.xpose.msra.mxu0 0
        %1205 = vmatprep.subr.bf16.mxu0 0
        %1206 = vmatpush1.bf16.xpose.msra.mxu0 0
        %1207 = vmatprep.subr.bf16.mxu0 0
        %1208 = vmatpush1.bf16.xpose.msra.mxu0 0
        %1209 = vmatprep.subr.bf16.mxu0 0
        %1210 = vmatpush1.bf16.xpose.msra.mxu0 0
        %1211 = vmatprep.subr.bf16.mxu0 0
        %1212 = vmatpush1.bf16.xpose.msra.mxu0 0
        %1213 = vmatprep.subr.bf16.mxu0 0
        %1214 = vmatpush1.bf16.xpose.msra.mxu0 0
        %1215 = vmatprep.subr.bf16.mxu0 0
        %1216 = vmatpush1.bf16.xpose.msra.mxu0 0
        %1217 = vmatprep.subr.bf16.mxu0 0
        %1218 = vmatpush1.bf16.xpose.msra.mxu0 0
        %1219 = vmatprep.subr.bf16.mxu0 0
        %1220 = vmatpush1.bf16.xpose.msra.mxu0 0
        %1221 = vmatprep.subr.bf16.mxu0 0
        %1222 = vmatpush1.bf16.xpose.msra.mxu0 0
        %1223 = vmatprep.mubr.bf16.mxu0 0
        %1224 = vmatmul.mubr.bf16.gmra.mrb[0].mxu0 %v1186
        %v1225 = vpop.f32.mrb[0].mxu0
        %v1226 = vadd.f32 %v385, %v1225
        %v1227 = vpop.f32.mrb[0].mxu0
        %v1228 = vpop.f32.mrb[0].mxu0
        %v1229 = vpop.f32.mrb[0].mxu0
        %1230 = vdwg.mxu0
        %v1231 = vsel %vm474, %v1176, -inf
        %1232 = vmax.xlane.f32.xlu0 %v1231
        %v1233 = vpop.xlane.xlu0 %1232
        %v1234 = vsel %vm474, %v1226, -inf
        %1235 = vmax.xlane.f32.xlu0 %v1234
        %v1236 = vpop.xlane.xlu0 %1235
        %v1237 = vsub.f32 %v1176, %v1233
        %v1238 = vsub.f32 %v1226, %v1236
        %v1239 = vmul.f32 %v1237, 1.442695
        %v1240 = vpow.pop %v1239
        %v1241 = vmul.f32 %v1238, 1.442695
        %v1242 = vpow.pop %v1241
        %v1243 = vsel %vm474, %v1240, 0.0
        %1244 = vadd.xlane.f32.xlu0 %v1243
        %v1245 = vpop.xlane.xlu0 %1244
        %v1246 = vsel %vm474, %v1242, 0.0
        %1247 = vadd.xlane.f32.xlu0 %v1246
        %v1248 = vpop.xlane.xlu0 %1247
        %v1249 = vrcp.pop %v1245
        %v1250 = vmul.f32 %v1240, %v1249
        %v1251 = vrcp.pop %v1248
        %v1252 = vmul.f32 %v1242, %v1251
        %v1253 = vpack.c.bf16 %v1250, %v1250
        %v1254 = vpack.c.bf16 %v1252, %v1252
        %1255 = vrot.lane.b32.xlu0 %v469, 40
        %v1256 = vpop.permute.xlu0 %1255
        %v1258 = vsel %vm474, %v1253, 0
        %v1261 = vsel %vm599, %v1256, 0
        %1263 = vmatprep.subr.bf16.mxu0 0
        %1264 = vmatpush1.bf16.msra.mxu0 %v1261
        %1265 = vmatprep.subr.bf16.mxu0 0
        %1266 = vmatpush1.bf16.msra.mxu0 0
        %1267 = vmatprep.subr.bf16.mxu0 0
        %1268 = vmatpush1.bf16.msra.mxu0 0
        %1269 = vmatprep.subr.bf16.mxu0 0
        %1270 = vmatpush1.bf16.msra.mxu0 0
        %1271 = vmatprep.subr.bf16.mxu0 0
        %1272 = vmatpush1.bf16.msra.mxu0 0
        %1273 = vmatprep.subr.bf16.mxu0 0
        %1274 = vmatpush1.bf16.msra.mxu0 0
        %1275 = vmatprep.subr.bf16.mxu0 0
        %1276 = vmatpush1.bf16.msra.mxu0 0
        %1277 = vmatprep.subr.bf16.mxu0 0
        %1278 = vmatpush1.bf16.msra.mxu0 0
        %1279 = vmatprep.subr.bf16.mxu0 0
        %1280 = vmatpush1.bf16.msra.mxu0 0
        %1281 = vmatprep.subr.bf16.mxu0 0
        %1282 = vmatpush1.bf16.msra.mxu0 0
        %1283 = vmatprep.subr.bf16.mxu0 0
        %1284 = vmatpush1.bf16.msra.mxu0 0
        %1285 = vmatprep.subr.bf16.mxu0 0
        %1286 = vmatpush1.bf16.msra.mxu0 0
        %1287 = vmatprep.subr.bf16.mxu0 0
        %1288 = vmatpush1.bf16.msra.mxu0 0
        %1289 = vmatprep.subr.bf16.mxu0 0
        %1290 = vmatpush1.bf16.msra.mxu0 0
        %1291 = vmatprep.subr.bf16.mxu0 0
        %1292 = vmatpush1.bf16.msra.mxu0 0
        %1293 = vmatprep.subr.bf16.mxu0 0
        %1294 = vmatpush1.bf16.msra.mxu0 0
        %1295 = vmatprep.mubr.bf16.mxu0 0
        %1296 = vmatmul.mubr.bf16.gmra.mrb[0].mxu0 %v1258
        %v1297 = vpop.f32.mrb[0].mxu0
        %v1298 = vadd.f32 0.0, %v1297
        %v1299 = vpop.f32.mrb[0].mxu0
        %v1300 = vpop.f32.mrb[0].mxu0
        %v1301 = vpop.f32.mrb[0].mxu0
        %1302 = vdwg.mxu0
        %1303 = vrot.lane.b32.xlu0 %v470, 40
        %v1304 = vpop.permute.xlu0 %1303
        %v1306 = vsel %vm474, %v1254, 0
        %v1309 = vsel %vm599, %v1304, 0
        %1311 = vmatprep.subr.bf16.mxu0 0
        %1312 = vmatpush1.bf16.msra.mxu0 %v1309
        %1313 = vmatprep.subr.bf16.mxu0 0
        %1314 = vmatpush1.bf16.msra.mxu0 0
        %1315 = vmatprep.subr.bf16.mxu0 0
        %1316 = vmatpush1.bf16.msra.mxu0 0
        %1317 = vmatprep.subr.bf16.mxu0 0
        %1318 = vmatpush1.bf16.msra.mxu0 0
        %1319 = vmatprep.subr.bf16.mxu0 0
        %1320 = vmatpush1.bf16.msra.mxu0 0
        %1321 = vmatprep.subr.bf16.mxu0 0
        %1322 = vmatpush1.bf16.msra.mxu0 0
        %1323 = vmatprep.subr.bf16.mxu0 0
        %1324 = vmatpush1.bf16.msra.mxu0 0
        %1325 = vmatprep.subr.bf16.mxu0 0
        %1326 = vmatpush1.bf16.msra.mxu0 0
        %1327 = vmatprep.subr.bf16.mxu0 0
        %1328 = vmatpush1.bf16.msra.mxu0 0
        %1329 = vmatprep.subr.bf16.mxu0 0
        %1330 = vmatpush1.bf16.msra.mxu0 0
        %1331 = vmatprep.subr.bf16.mxu0 0
        %1332 = vmatpush1.bf16.msra.mxu0 0
        %1333 = vmatprep.subr.bf16.mxu0 0
        %1334 = vmatpush1.bf16.msra.mxu0 0
        %1335 = vmatprep.subr.bf16.mxu0 0
        %1336 = vmatpush1.bf16.msra.mxu0 0
        %1337 = vmatprep.subr.bf16.mxu0 0
        %1338 = vmatpush1.bf16.msra.mxu0 0
        %1339 = vmatprep.subr.bf16.mxu0 0
        %1340 = vmatpush1.bf16.msra.mxu0 0
        %1341 = vmatprep.subr.bf16.mxu0 0
        %1342 = vmatpush1.bf16.msra.mxu0 0
        %1343 = vmatprep.mubr.bf16.mxu0 0
        %1344 = vmatmul.mubr.bf16.gmra.mrb[0].mxu0 %v1306
        %v1345 = vpop.f32.mrb[0].mxu0
        %v1346 = vadd.f32 0.0, %v1345
        %v1347 = vpop.f32.mrb[0].mxu0
        %v1348 = vpop.f32.mrb[0].mxu0
        %v1349 = vpop.f32.mrb[0].mxu0
        %1350 = vdwg.mxu0
        %1353 = vrot.lane.b32.xlu0 %v858, 8
        %v1354 = vpop.permute.xlu0 %1353
        %1355 = vrot.lane.b32.xlu0 %v906, 8
        %v1356 = vpop.permute.xlu0 %1355
        %1361 = vrot.lane.b32.xlu0 %v1078, 16
        %v1362 = vpop.permute.xlu0 %1361
        %1363 = vrot.lane.b32.xlu0 %v1126, 16
        %v1364 = vpop.permute.xlu0 %1363
        %1369 = vrot.lane.b32.xlu0 %v1298, 24
        %v1370 = vpop.permute.xlu0 %1369
        %1371 = vrot.lane.b32.xlu0 %v1346, 24
        %v1372 = vpop.permute.xlu0 %1371
        %v1375 = vsel %vm474, %v638, %v1354
        %v1376 = vsel %vm474, %v686, %v1356
        %vm1377 = vcmask 130048
        %v1378 = vsel %vm1377, %v1375, %v1362
        %v1379 = vsel %vm1377, %v1376, %v1364
        %vm1380 = vcmask 195584
        %v1381 = vsel %vm1380, %v1378, %v1370
        %v1382 = vsel %vm1380, %v1379, %v1372
        %v1383 = vpack.c.bf16 %v1382, %v1381
        %v1384 = vlaneseq
        %v1385 = vshrl.u32 %v1384, 7
        %v1386 = vsub.s32 2, %v1385
        %v1387 = vrot.slane %v406, %v1386
        %v1392 = vunpack.c.l.b16 %v390
        %v1393 = vunpack.c.l.b16 %v391
        %v1394 = vunpack.c.l.b16 %v392
        %v1395 = vunpack.c.l.b16 %v393
        %v1396 = vpack.c.b16 %v1393, %v1392
        %v1397 = vpack.c.b16 %v1395, %v1394
        %v1401 = vsel %vm424, %v1383, 0
        %1403 = vmatprep.subr.bf16.mxu0 0
        %1404 = vmatpush1.bf16.msra.mxu0 %v1396
        %1405 = vmatprep.subr.bf16.mxu0 0
        %1406 = vmatpush1.bf16.msra.mxu0 %v1397
        %1407 = vmatprep.subr.bf16.mxu0 0
        %1408 = vmatpush1.bf16.msra.mxu0 0
        %1409 = vmatprep.subr.bf16.mxu0 0
        %1410 = vmatpush1.bf16.msra.mxu0 0
        %1411 = vmatprep.subr.bf16.mxu0 0
        %1412 = vmatpush1.bf16.msra.mxu0 0
        %1413 = vmatprep.subr.bf16.mxu0 0
        %1414 = vmatpush1.bf16.msra.mxu0 0
        %1415 = vmatprep.subr.bf16.mxu0 0
        %1416 = vmatpush1.bf16.msra.mxu0 0
        %1417 = vmatprep.subr.bf16.mxu0 0
        %1418 = vmatpush1.bf16.msra.mxu0 0
        %1419 = vmatprep.subr.bf16.mxu0 0
        %1420 = vmatpush1.bf16.msra.mxu0 0
        %1421 = vmatprep.subr.bf16.mxu0 0
        %1422 = vmatpush1.bf16.msra.mxu0 0
        %1423 = vmatprep.subr.bf16.mxu0 0
        %1424 = vmatpush1.bf16.msra.mxu0 0
        %1425 = vmatprep.subr.bf16.mxu0 0
        %1426 = vmatpush1.bf16.msra.mxu0 0
        %1427 = vmatprep.subr.bf16.mxu0 0
        %1428 = vmatpush1.bf16.msra.mxu0 0
        %1429 = vmatprep.subr.bf16.mxu0 0
        %1430 = vmatpush1.bf16.msra.mxu0 0
        %1431 = vmatprep.subr.bf16.mxu0 0
        %1432 = vmatpush1.bf16.msra.mxu0 0
        %1433 = vmatprep.subr.bf16.mxu0 0
        %1434 = vmatpush1.bf16.msra.mxu0 0
        %1435 = vmatprep.mubr.bf16.mxu0 0
        %1436 = vmatmul.mubr.bf16.gmra.mrb[0].mxu0 %v1401
        %v1437 = vpop.f32.mrb[0].mxu0
        %v1438 = vadd.f32 %v1387, %v1437
        %v1439 = vpop.f32.mrb[0].mxu0
        %v1440 = vpop.f32.mrb[0].mxu0
        %v1441 = vadd.f32 %v1387, %v1440
        %v1442 = vpop.f32.mrb[0].mxu0
        %1443 = vdwg.mxu0
        %v1444 = vadd.f32 %v382, %v1438
        %v1445 = vadd.f32 %v383, %v1441
        %v1446 = vsel %vm424, %v1444, 0.0
        %1447 = vadd.xlane.f32.xlu0 %v1446
        %v1448 = vpop.xlane.xlu0 %1447
        %v1449 = vsel %vm424, %v1445, 0.0
        %1450 = vadd.xlane.f32.xlu0 %v1449
        %v1451 = vpop.xlane.xlu0 %1450
        %v1452 = vrcp.pop 32.0
        %v1453 = vmul.f32 %v1448, %v1452
        %v1454 = vmul.f32 %v1451, %v1452
        %v1455 = vsub.f32 %v1444, %v1453
        %v1456 = vsub.f32 %v1445, %v1454
        %v1457 = vmul.f32 %v1455, %v1455
        %v1458 = vmul.f32 %v1456, %v1456
        %v1459 = vsel %vm424, %v1457, 0.0
        %1460 = vadd.xlane.f32.xlu0 %v1459
        %v1461 = vpop.xlane.xlu0 %1460
        %v1462 = vsel %vm424, %v1458, 0.0
        %1463 = vadd.xlane.f32.xlu0 %v1462
        %v1464 = vpop.xlane.xlu0 %1463
        %v1465 = vmul.f32 %v1461, %v1452
        %v1466 = vmul.f32 %v1464, %v1452
        %v1467 = vadd.f32 %v1465, 1e-06
        %v1468 = vadd.f32 %v1466, 1e-06
        %v1469 = vrsqrt.pop %v1467
        %v1470 = vrsqrt.pop %v1468
        %v1471 = vmul.f32 %v1455, %v1469
        %v1472 = vmul.f32 %v1456, %v1470
        %v1473 = vlaneseq
        %v1474 = vshrl.u32 %v1473, 7
        %v1475 = vsub.s32 3, %v1474
        %v1476 = vrot.slane %v406, %v1475
        %v1477 = vmul.f32 %v1471, %v1476
        %v1478 = vmul.f32 %v1472, %v1476
        %v1479 = vlaneseq
        %v1480 = vshrl.u32 %v1479, 7
        %v1481 = vsub.s32 4, %v1480
        %v1482 = vrot.slane %v406, %v1481
        %v1483 = vadd.f32 %v1477, %v1482
        %v1484 = vadd.f32 %v1478, %v1482
        %v1485 = vpack.c.bf16 %v1484, %v1483
        %v1486 = vlaneseq
        %v1487 = vshrl.u32 %v1486, 7
        %v1488 = vsub.s32 1, %v1487
        %v1489 = vrot.slane %v406, %v1488
        %v1494 = vunpack.c.l.b16 %v394
        %v1495 = vunpack.c.l.b16 %v395
        %v1496 = vunpack.c.l.b16 %v396
        %v1497 = vunpack.c.l.b16 %v397
        %v1498 = vpack.c.b16 %v1495, %v1494
        %v1499 = vpack.c.b16 %v1497, %v1496
        %v1503 = vsel %vm424, %v1485, 0
        %1505 = vmatprep.subr.bf16.mxu0 0
        %1506 = vmatpush1.bf16.msra.mxu0 %v1498
        %1507 = vmatprep.subr.bf16.mxu0 0
        %1508 = vmatpush1.bf16.msra.mxu0 %v1499
        %1509 = vmatprep.subr.bf16.mxu0 0
        %1510 = vmatpush1.bf16.msra.mxu0 0
        %1511 = vmatprep.subr.bf16.mxu0 0
        %1512 = vmatpush1.bf16.msra.mxu0 0
        %1513 = vmatprep.subr.bf16.mxu0 0
        %1514 = vmatpush1.bf16.msra.mxu0 0
        %1515 = vmatprep.subr.bf16.mxu0 0
        %1516 = vmatpush1.bf16.msra.mxu0 0
        %1517 = vmatprep.subr.bf16.mxu0 0
        %1518 = vmatpush1.bf16.msra.mxu0 0
        %1519 = vmatprep.subr.bf16.mxu0 0
        %1520 = vmatpush1.bf16.msra.mxu0 0
        %1521 = vmatprep.subr.bf16.mxu0 0
        %1522 = vmatpush1.bf16.msra.mxu0 0
        %1523 = vmatprep.subr.bf16.mxu0 0
        %1524 = vmatpush1.bf16.msra.mxu0 0
        %1525 = vmatprep.subr.bf16.mxu0 0
        %1526 = vmatpush1.bf16.msra.mxu0 0
        %1527 = vmatprep.subr.bf16.mxu0 0
        %1528 = vmatpush1.bf16.msra.mxu0 0
        %1529 = vmatprep.subr.bf16.mxu0 0
        %1530 = vmatpush1.bf16.msra.mxu0 0
        %1531 = vmatprep.subr.bf16.mxu0 0
        %1532 = vmatpush1.bf16.msra.mxu0 0
        %1533 = vmatprep.subr.bf16.mxu0 0
        %1534 = vmatpush1.bf16.msra.mxu0 0
        %1535 = vmatprep.subr.bf16.mxu0 0
        %1536 = vmatpush1.bf16.msra.mxu0 0
        %1537 = vmatprep.mubr.bf16.mxu0 0
        %1538 = vmatmul.mubr.bf16.gmra.mrb[0].mxu0 %v1503
        %v1539 = vpop.f32.mrb[0].mxu0
        %v1540 = vadd.f32 %v1489, %v1539
        %v1541 = vpop.f32.mrb[0].mxu0
        %v1542 = vpop.f32.mrb[0].mxu0
        %v1543 = vadd.f32 %v1489, %v1542
        %v1544 = vpop.f32.mrb[0].mxu0
        %1545 = vdwg.mxu0
        %v1546 = vmax.f32 %v1540, 0.0
        %v1547 = vmax.f32 %v1543, 0.0
        %v1548 = vpack.c.bf16 %v1547, %v1546
        %v1549 = vlaneseq
        %v1550 = vshrl.u32 %v1549, 7
        %v1551 = vsub.s32 5, %v1550
        %v1552 = vrot.slane %v406, %v1551
        %v1561 = vunpack.c.l.b16 %v398
        %v1562 = vunpack.c.l.b16 %v399
        %v1563 = vunpack.c.l.b16 %v400
        %v1564 = vunpack.c.l.b16 %v401
        %v1565 = vunpack.c.l.b16 %v402
        %v1566 = vunpack.c.l.b16 %v403
        %v1567 = vunpack.c.l.b16 %v404
        %v1568 = vunpack.c.l.b16 %v405
        %v1569 = vpack.c.b16 %v1562, %v1561
        %v1570 = vpack.c.b16 %v1564, %v1563
        %v1571 = vpack.c.b16 %v1566, %v1565
        %v1572 = vpack.c.b16 %v1568, %v1567
        %vm1577 = vcmask 523264
        %v1579 = vsel %vm1577, %v1548, 0
        %1581 = vmatprep.subr.bf16.mxu0 0
        %1582 = vmatpush1.bf16.msra.mxu0 %v1569
        %1583 = vmatprep.subr.bf16.mxu0 0
        %1584 = vmatpush1.bf16.msra.mxu0 %v1570
        %1585 = vmatprep.subr.bf16.mxu0 0
        %1586 = vmatpush1.bf16.msra.mxu0 %v1571
        %1587 = vmatprep.subr.bf16.mxu0 0
        %1588 = vmatpush1.bf16.msra.mxu0 %v1572
        %1589 = vmatprep.subr.bf16.mxu0 0
        %1590 = vmatpush1.bf16.msra.mxu0 0
        %1591 = vmatprep.subr.bf16.mxu0 0
        %1592 = vmatpush1.bf16.msra.mxu0 0
        %1593 = vmatprep.subr.bf16.mxu0 0
        %1594 = vmatpush1.bf16.msra.mxu0 0
        %1595 = vmatprep.subr.bf16.mxu0 0
        %1596 = vmatpush1.bf16.msra.mxu0 0
        %1597 = vmatprep.subr.bf16.mxu0 0
        %1598 = vmatpush1.bf16.msra.mxu0 0
        %1599 = vmatprep.subr.bf16.mxu0 0
        %1600 = vmatpush1.bf16.msra.mxu0 0
        %1601 = vmatprep.subr.bf16.mxu0 0
        %1602 = vmatpush1.bf16.msra.mxu0 0
        %1603 = vmatprep.subr.bf16.mxu0 0
        %1604 = vmatpush1.bf16.msra.mxu0 0
        %1605 = vmatprep.subr.bf16.mxu0 0
        %1606 = vmatpush1.bf16.msra.mxu0 0
        %1607 = vmatprep.subr.bf16.mxu0 0
        %1608 = vmatpush1.bf16.msra.mxu0 0
        %1609 = vmatprep.subr.bf16.mxu0 0
        %1610 = vmatpush1.bf16.msra.mxu0 0
        %1611 = vmatprep.subr.bf16.mxu0 0
        %1612 = vmatpush1.bf16.msra.mxu0 0
        %1613 = vmatprep.mubr.bf16.mxu0 0
        %1614 = vmatmul.mubr.bf16.gmra.mrb[0].mxu0 %v1579
        %v1615 = vpop.f32.mrb[0].mxu0
        %v1616 = vadd.f32 %v1552, %v1615
        %v1617 = vpop.f32.mrb[0].mxu0
        %v1618 = vpop.f32.mrb[0].mxu0
        %v1619 = vadd.f32 %v1552, %v1618
        %v1620 = vpop.f32.mrb[0].mxu0
        %1621 = vdwg.mxu0
        %v1622 = vadd.f32 %v1616, %v1444
        %v1623 = vadd.f32 %v1619, %v1445
        %v1624 = vadd.f32 %v1444, %v1622
        %v1625 = vadd.f32 %v1445, %v1623
        %v1626 = vsel %vm424, %v1624, 0.0
        %1627 = vadd.xlane.f32.xlu0 %v1626
        %v1628 = vpop.xlane.xlu0 %1627
        %v1629 = vsel %vm424, %v1625, 0.0
        %1630 = vadd.xlane.f32.xlu0 %v1629
        %v1631 = vpop.xlane.xlu0 %1630
        %v1632 = vmul.f32 %v1628, %v1452
        %v1633 = vmul.f32 %v1631, %v1452
        %v1634 = vsub.f32 %v1624, %v1632
        %v1635 = vsub.f32 %v1625, %v1633
        %v1636 = vmul.f32 %v1634, %v1634
        %v1637 = vmul.f32 %v1635, %v1635
        %v1638 = vsel %vm424, %v1636, 0.0
        %1639 = vadd.xlane.f32.xlu0 %v1638
        %v1640 = vpop.xlane.xlu0 %1639
        %v1641 = vsel %vm424, %v1637, 0.0
        %1642 = vadd.xlane.f32.xlu0 %v1641
        %v1643 = vpop.xlane.xlu0 %1642
        %v1644 = vmul.f32 %v1640, %v1452
        %v1645 = vmul.f32 %v1643, %v1452
        %v1646 = vadd.f32 %v1644, 1e-06
        %v1647 = vadd.f32 %v1645, 1e-06
        %v1648 = vrsqrt.pop %v1646
        %v1649 = vrsqrt.pop %v1647
        %v1650 = vmul.f32 %v1634, %v1648
        %v1651 = vmul.f32 %v1635, %v1649
        %v1652 = vlaneseq
        %v1653 = vshrl.u32 %v1652, 7
        %v1654 = vsub.s32 6, %v1653
        %v1655 = vrot.slane %v406, %v1654
        %v1656 = vmul.f32 %v1650, %v1655
        %v1657 = vmul.f32 %v1651, %v1655
        %v1658 = vlaneseq
        %v1659 = vshrl.u32 %v1658, 7
        %v1660 = vsub.s32 7, %v1659
        %v1661 = vrot.slane %v406, %v1660
        %v1662 = vadd.f32 %v1656, %v1661
        %v1663 = vadd.f32 %v1657, %v1661
        %1664 = vst.msk [vmem:[#allocation7] sm:$0xff] %vm424, %v1662
        %1665 = vst.msk [vmem:[#allocation7 + $0x8] sm:$0xff] %vm424, %v1663
        // Predicated region
        $region61: #{tpu_custom_call.1} parent=47 // pred_check
          %p1666 = pneg %p206
        $region62: #{tpu_custom_call.1} parent=47 // pred_check_branch
          %1668 = sbr.rel (%p1666) target = $region64
        $region63: #{tpu_custom_call.1} parent=47 // pred_region
          %s1670 = ssub.s32 256, 256
          %1671 = vsyncadd [#allocation4], %s1670
          %s1672 = sshll.u32 [#allocation7], 4
          %s1673 = int_to_ptr.vmem [resolvable:$true] %s1672
          %1678 = dma.vmem_to_hbm [thread:$0]  %s1673, 256, %s7, [#allocation4], 128, 128, 8
        $region64: #{tpu_custom_call.1} parent=47 // pred_fallthru
          _
        // Predicated region
        $region65: #{tpu_custom_call.1} parent=47 // pred_check
          %p1679 = pneg %p206
        $region66: #{tpu_custom_call.1} parent=47 // pred_check_branch
          %1681 = sbr.rel (%p1679) target = $region68
        $region67: #{tpu_custom_call.1} parent=47 // pred_region
          %1682 = dma.done [#allocation4], 256
        $region68: #{tpu_custom_call.1} parent=47 // pred_fallthru
          _
      $region48: #{tpu_custom_call.1} parent=5 // pred_fallthru
        _
      %p1683 = scmp.le.s32.totalorder 2, %s16
      // Predicated region
      $region69: #{tpu_custom_call.1} parent=5 // pred_check
        %p1684 = pneg %p1683
      $region70: #{tpu_custom_call.1} parent=5 // pred_check_branch
        %1686 = sbr.rel (%p1684) target = $region72
      $region71: #{tpu_custom_call.1} parent=5 // pred_region
        %s1687 = ssub.s32 %s16, 2
      $region72: #{tpu_custom_call.1} parent=5 // pred_fallthru
        _
    $region6: #{tpu_custom_call.1} parent=1 // loop_footer
      %s20 = sadd.s32 1, %s16
    $region7: #{tpu_custom_call.1} parent=1 // loop_footer_branch
      %15 = sbr.rel target = $region3
    $region8: #{tpu_custom_call.1} parent=1 // loop_exit
      _
    %1688 = vsyncpa [#allocation3], 1
    %s1689 = scalar_lea.sflag [#allocation3], 1
    %1690 = vsyncpa %s1689, 1
    %1691 = vsyncpa [#allocation6], 1
    %1692 = vsyncpa [#allocation4], 1
    %s1693 = scalar_lea.sflag [#allocation4], 1
    %1694 = vsyncpa %s1693, 1

</llo_original>
